<compile_context>
chip_gen: v7x
topology: tpu7x:2x2x1
jax: 0.10.0
libtpu: 0.0.40
codegen_flags: <defaults>
</compile_context>

<pallas_src>
import functools
import math

import jax
import jax.numpy as jnp
from jax import lax
from jax.experimental import pallas as pl
from jax.experimental.pallas import tpu as pltpu


def _round_up(x, m):
    return ((x + m - 1) // m) * m


def _policy_mlp_kernel(x_ref, w1_ref, wmid_ref, whead_ref, bhid_ref, bhead_ref, out_ref,
                       *, log_std_min, log_std_max, num_actions):
    """One batch tile: 4x (matmul+bias+relu) + fused [mean||log_std] head + clamp."""
    mx_dtype = w1_ref.dtype            # bf16 weights -> bf16 MXU operands, f32 accum

    # Layer 1: (block_b, Kin) x (Kin, Hp)
    h = jnp.dot(x_ref[...].astype(mx_dtype), w1_ref[...],
                preferred_element_type=jnp.float32) + bhid_ref[0]
    h = jnp.maximum(h, 0.0)

    # Layers 2-4: (block_b, Hp) x (Hp, Hp), statically unrolled.
    for i in range(3):
        h = jnp.dot(h.astype(mx_dtype), wmid_ref[i],
                    preferred_element_type=jnp.float32) + bhid_ref[i + 1]
        h = jnp.maximum(h, 0.0)

    # Fused head: lanes [0, A) = mean, lanes [A, 2A) = log_std, rest = zero padding.
    y = jnp.dot(h.astype(mx_dtype), whead_ref[...],
                preferred_element_type=jnp.float32) + bhead_ref[...]

    # Clamp everything at or beyond the log_std lanes (padding lanes are zero, and
    # clip(0, log_std_min, log_std_max) = 0, so a single compare suffices).
    lane = lax.broadcasted_iota(jnp.int32, y.shape, dimension=1)
    y = jnp.where(lane >= num_actions, jnp.clip(y, log_std_min, log_std_max), y)

    out_ref[...] = y.astype(out_ref.dtype)


def pack_policy_params(params, param_dtype=jnp.bfloat16):
    """Pack the 6 linears into per-layer-padded stacks (done once, at init time).

    params: dict with w1..w4 (in,out), b1..b4 (1,out), wm/bm, ws/bs.
    Returns ((w1, w_mid, w_head, b_hidden, b_head), meta).
    """
    num_inputs = params["w1"].shape[0]
    hidden = params["w1"].shape[1]
    num_actions = params["wm"].shape[1]

    Kin = _round_up(num_inputs, 128)        # layer-1 contraction dim
    Hp = _round_up(hidden, 128)             # hidden K/N (prefer hidden % 256 == 0 on v6e/v7x)
    Nout = _round_up(2 * num_actions, 128)  # fused head output lanes

    def pad2(a, rows, cols):
        return jnp.pad(a, ((0, rows - a.shape[0]), (0, cols - a.shape[1])))

    w1 = pad2(params["w1"], Kin, Hp).astype(param_dtype)
    w_mid = jnp.stack([pad2(params["w2"], Hp, Hp),
                       pad2(params["w3"], Hp, Hp),
                       pad2(params["w4"], Hp, Hp)]).astype(param_dtype)

    # Fuse the two heads along the lane (output) axis: [mean || log_std].
    w_head = pad2(jnp.concatenate([params["wm"], params["ws"]], axis=1),
                  Hp, Nout).astype(param_dtype)

    # Biases stay f32 (bias add and all elementwise math are f32).
    b_hidden = jnp.stack([pad2(params["b1"], 1, Hp),
                          pad2(params["b2"], 1, Hp),
                          pad2(params["b3"], 1, Hp),
                          pad2(params["b4"], 1, Hp)]).astype(jnp.float32)
    b_head = pad2(jnp.concatenate([params["bm"], params["bs"]], axis=1),
                  1, Nout).astype(jnp.float32)

    meta = dict(num_inputs=num_inputs, hidden=hidden, num_actions=num_actions,
                padded_in=Kin, padded_hidden=Hp, padded_out=Nout)
    return (w1, w_mid, w_head, b_hidden, b_head), meta


def policy_network_forward(state, packed, *, log_std_min=-20.0, log_std_max=2.0):
    """Full PolicyNetwork.forward in a single Pallas call.

    state:  (B, num_inputs) float32
    packed: output of pack_policy_params
    returns (mean, log_std), both (B, num_actions) float32
    """
    (w1, w_mid, w_head, b_hidden, b_head), meta = packed
    B, num_inputs = state.shape
    Kin, Hp, Nout = meta["padded_in"], meta["padded_hidden"], meta["padded_out"]
    A = meta["num_actions"]

    # Batch tiling: big tiles (weights are VMEM-resident so per-step cost is only
    # grid overhead); keep at least 2 tiles when B is large enough so both v7x
    # TensorCores participate via the "parallel" grid axis.
    if B >= 16:
        block_b = min(512, _round_up((B + 1) // 2, 8))
    else:
        block_b = _round_up(B, 8)
    Bp = _round_up(B, block_b)
    grid_b = Bp // block_b

    # Zero-pad batch rows and feature lanes; exact (padded weight rows/cols are zero).
    x = jnp.pad(state.astype(jnp.float32), ((0, Bp - B), (0, Kin - num_inputs)))

    itemsize_w = jnp.dtype(w1.dtype).itemsize
    weight_elems = Kin * Hp + 3 * Hp * Hp + Hp * Nout
    flops = 2 * Bp * weight_elems
    bytes_accessed = (Bp * Kin * 4
                      + weight_elems * itemsize_w
                      + (4 * Hp + Nout) * 4
                      + Bp * Nout * 4)

    # VMEM budget from the actual buffers: weights (x2 in case single-buffering is
    # unavailable) + double-buffered in/out tiles + slack. Floor at the 32 MiB
    # default, cap below v7x's 64 MiB physical.
    weight_bytes = weight_elems * itemsize_w + (4 * Hp + Nout) * 4
    io_tile_bytes = 2 * block_b * (Kin + Nout) * 4
    vmem_limit = int(max(32 << 20,
                         min(2 * weight_bytes + io_tile_bytes + (8 << 20), 56 << 20)))

    kernel = functools.partial(
        _policy_mlp_kernel,
        log_std_min=float(log_std_min),
        log_std_max=float(log_std_max),
        num_actions=A,
    )

    def make_call(weight_buffers):
        # Weights/biases never change across the grid: request single buffering so a
        # large hidden stack isn't allocated twice (matters under v7x's 64 MiB VMEM).
        wkw = {} if weight_buffers is None else dict(pipeline_mode=pl.Buffered(weight_buffers))
        return pl.pallas_call(
            kernel,
            out_shape=jax.ShapeDtypeStruct((Bp, Nout), jnp.float32),
            grid=(grid_b,),
            in_specs=[
                pl.BlockSpec((block_b, Kin), lambda i: (i, 0)),          # state tile
                pl.BlockSpec((Kin, Hp), lambda i: (0, 0), **wkw),        # w1
                pl.BlockSpec((3, Hp, Hp), lambda i: (0, 0, 0), **wkw),   # w2..w4
                pl.BlockSpec((Hp, Nout), lambda i: (0, 0), **wkw),       # fused head W
                pl.BlockSpec((4, 1, Hp), lambda i: (0, 0, 0), **wkw),    # b1..b4
                pl.BlockSpec((1, Nout), lambda i: (0, 0), **wkw),        # fused head b
            ],
            out_specs=pl.BlockSpec((block_b, Nout), lambda i: (i, 0)),
            compiler_params=pltpu.CompilerParams(
                dimension_semantics=("parallel",),
                vmem_limit_bytes=vmem_limit),
            cost_estimate=pl.CostEstimate(
                flops=flops, transcendentals=0, bytes_accessed=bytes_accessed),
        )

    args = (x, w1, w_mid, w_head, b_hidden, b_head)
    try:
        out = jax.block_until_ready(make_call(1)(*args))
    except Exception:
        # pl.Buffered(1) not supported on this jax/Mosaic build -> default buffering.
        out = make_call(None)(*args)

    # Free slices in the wrapper: split the fused lane-dense slab.
    mean = out[:B, :A]
    log_std = out[:B, A:2 * A]
    return mean, log_std


def init_policy_params(key, num_inputs, num_actions, hidden_size, init_w=0.003):
    """Deterministic init mirroring nn.Linear defaults + the explicit head init."""
    keys = jax.random.split(key, 12)

    def linear(kw, kb, fan_in, fan_out):
        # PyTorch nn.Linear default: U(-1/sqrt(fan_in), 1/sqrt(fan_in))
        bound = 1.0 / math.sqrt(fan_in)
        w = jax.random.uniform(kw, (fan_in, fan_out), jnp.float32, -bound, bound)
        b = jax.random.uniform(kb, (1, fan_out), jnp.float32, -bound, bound)
        return w, b

    w1, b1 = linear(keys[0], keys[1], num_inputs, hidden_size)
    w2, b2 = linear(keys[2], keys[3], hidden_size, hidden_size)
    w3, b3 = linear(keys[4], keys[5], hidden_size, hidden_size)
    w4, b4 = linear(keys[6], keys[7], hidden_size, hidden_size)
    # Heads: explicit uniform(-init_w, init_w) as in the module's __init__
    wm = jax.random.uniform(keys[8], (hidden_size, num_actions), jnp.float32, -init_w, init_w)
    bm = jax.random.uniform(keys[9], (1, num_actions), jnp.float32, -init_w, init_w)
    ws = jax.random.uniform(keys[10], (hidden_size, num_actions), jnp.float32, -init_w, init_w)
    bs = jax.random.uniform(keys[11], (1, num_actions), jnp.float32, -init_w, init_w)

    return dict(w1=w1, b1=b1, w2=w2, b2=b2, w3=w3, b3=b3, w4=w4, b4=b4,
                wm=wm, bm=bm, ws=ws, bs=bs)


def _reference_forward(state, p, log_std_min=-20.0, log_std_max=2.0):
    h = jnp.maximum(state @ p["w1"] + p["b1"], 0.0)
    h = jnp.maximum(h @ p["w2"] + p["b2"], 0.0)
    h = jnp.maximum(h @ p["w3"] + p["b3"], 0.0)
    h = jnp.maximum(h @ p["w4"] + p["b4"], 0.0)
    mean = h @ p["wm"] + p["bm"]
    log_std = jnp.clip(h @ p["ws"] + p["bs"], log_std_min, log_std_max)
    return mean, log_std


if __name__ == "__main__":
    # Small shapes consistent with the module: state (B, num_inputs)
    B, NUM_INPUTS, NUM_ACTIONS, HIDDEN = 2, 16, 4, 32

    key = jax.random.PRNGKey(0)
    k_state, k_params = jax.random.split(key)

    state = jax.random.normal(k_state, (B, NUM_INPUTS), jnp.float32)
    params = init_policy_params(k_params, NUM_INPUTS, NUM_ACTIONS, HIDDEN)
    mean_ref, log_std_ref = _reference_forward(state, params)

    # Default packing: bf16 MXU operands (perf path) -> looser tolerance.
    packed_bf16 = pack_policy_params(params)
    mean, log_std = policy_network_forward(state, packed_bf16)
    jax.block_until_ready((mean, log_std))
    assert mean.shape == (B, NUM_ACTIONS) and log_std.shape == (B, NUM_ACTIONS)
    assert jnp.allclose(mean, mean_ref, atol=2e-2, rtol=2e-2)
    assert jnp.allclose(log_std, log_std_ref, atol=2e-2, rtol=2e-2)
    assert bool(jnp.all(log_std >= -20.0)) and bool(jnp.all(log_std <= 2.0))

    # Exact f32 packing path: tight reference check.
    packed_f32 = pack_policy_params(params, param_dtype=jnp.float32)
    mean32, log_std32 = policy_network_forward(state, packed_f32)
    jax.block_until_ready((mean32, log_std32))
    assert jnp.allclose(mean32, mean_ref, atol=1e-5, rtol=1e-5)
    assert jnp.allclose(log_std32, log_std_ref, atol=1e-5, rtol=1e-5)

    print("KERNEL_OK")
</pallas_src>

<mosaic_0001>
module attributes {stable_mosaic.version = 11 : i64} {
  func.func @_policy_mlp_kernel(%arg0: i32, %arg1: memref<8x128xf32, #tpu.memory_space<vmem>>, %arg2: memref<128x128xbf16, #tpu.memory_space<vmem>>, %arg3: memref<3x128x128xbf16, #tpu.memory_space<vmem>>, %arg4: memref<128x128xbf16, #tpu.memory_space<vmem>>, %arg5: memref<4x1x128xf32, #tpu.memory_space<vmem>>, %arg6: memref<1x128xf32, #tpu.memory_space<vmem>>, %arg7: memref<8x128xf32, #tpu.memory_space<vmem>>) attributes {dimension_semantics = [#tpu.dimension_semantics<parallel>], iteration_bounds = array<i64: 1>, scalar_prefetch = 0 : i64, scratch_operands = 0 : i64, tpu.core_type = #tpu.core_type<tc>, window_params = [{transform_indices = @transform_0, window_bounds = array<i64: 8, 128>}, {pipeline_mode = #tpu.pipeline_mode<synchronous>, transform_indices = @transform_1, window_bounds = array<i64: 128, 128>}, {pipeline_mode = #tpu.pipeline_mode<synchronous>, transform_indices = @transform_2, window_bounds = array<i64: 3, 128, 128>}, {pipeline_mode = #tpu.pipeline_mode<synchronous>, transform_indices = @transform_3, window_bounds = array<i64: 128, 128>}, {pipeline_mode = #tpu.pipeline_mode<synchronous>, transform_indices = @transform_4, window_bounds = array<i64: 4, 1, 128>}, {pipeline_mode = #tpu.pipeline_mode<synchronous>, transform_indices = @transform_5, window_bounds = array<i64: 1, 128>}, {transform_indices = @transform_6, window_bounds = array<i64: 8, 128>}]} {
    %c0 = arith.constant 0 : index
    %c0_0 = arith.constant 0 : index
    %0 = vector.load %arg1[%c0, %c0_0] : memref<8x128xf32, #tpu.memory_space<vmem>>, vector<8x128xf32>
    %1 = arith.truncf %0 : vector<8x128xf32> to vector<8x128xbf16>
    %c0_1 = arith.constant 0 : index
    %c0_2 = arith.constant 0 : index
    %2 = vector.load %arg2[%c0_1, %c0_2] : memref<128x128xbf16, #tpu.memory_space<vmem>>, vector<128x128xbf16>
    %cst = arith.constant dense<0.000000e+00> : vector<8x128xf32>
    %3 = tpu.matmul %1, %2, %cst {dimension_numbers = #tpu.dot_dimension_numbers<[1], [0], [0], [1], [0, 0, 1, 1], [], []>} : vector<8x128xbf16>, vector<128x128xbf16>, vector<8x128xf32> -> vector<8x128xf32>
    %c0_3 = arith.constant 0 : index
    %c0_4 = arith.constant 0 : index
    %c0_5 = arith.constant 0 : index
    %4 = vector.load %arg5[%c0_3, %c0_4, %c0_5] : memref<4x1x128xf32, #tpu.memory_space<vmem>>, vector<1x1x128xf32>
    %5 = vector.shape_cast %4 : vector<1x1x128xf32> to vector<1x128xf32>
    %6 = vector.broadcast %5 : vector<1x128xf32> to vector<8x128xf32>
    %7 = arith.addf %3, %6 : vector<8x128xf32>
    %cst_6 = arith.constant 0.000000e+00 : f32
    %8 = vector.broadcast %cst_6 : f32 to vector<8x128xf32>
    %9 = arith.maximumf %7, %8 : vector<8x128xf32>
    %10 = arith.truncf %9 : vector<8x128xf32> to vector<8x128xbf16>
    %c0_7 = arith.constant 0 : index
    %c0_8 = arith.constant 0 : index
    %c0_9 = arith.constant 0 : index
    %11 = vector.load %arg3[%c0_7, %c0_8, %c0_9] : memref<3x128x128xbf16, #tpu.memory_space<vmem>>, vector<1x128x128xbf16>
    %12 = vector.shape_cast %11 : vector<1x128x128xbf16> to vector<128x128xbf16>
    %cst_10 = arith.constant dense<0.000000e+00> : vector<8x128xf32>
    %13 = tpu.matmul %10, %12, %cst_10 {dimension_numbers = #tpu.dot_dimension_numbers<[1], [0], [0], [1], [0, 0, 1, 1], [], []>} : vector<8x128xbf16>, vector<128x128xbf16>, vector<8x128xf32> -> vector<8x128xf32>
    %c1 = arith.constant 1 : index
    %c0_11 = arith.constant 0 : index
    %c0_12 = arith.constant 0 : index
    %14 = vector.load %arg5[%c1, %c0_11, %c0_12] : memref<4x1x128xf32, #tpu.memory_space<vmem>>, vector<1x1x128xf32>
    %15 = vector.shape_cast %14 : vector<1x1x128xf32> to vector<1x128xf32>
    %16 = vector.broadcast %15 : vector<1x128xf32> to vector<8x128xf32>
    %17 = arith.addf %13, %16 : vector<8x128xf32>
    %cst_13 = arith.constant 0.000000e+00 : f32
    %18 = vector.broadcast %cst_13 : f32 to vector<8x128xf32>
    %19 = arith.maximumf %17, %18 : vector<8x128xf32>
    %20 = arith.truncf %19 : vector<8x128xf32> to vector<8x128xbf16>
    %c1_14 = arith.constant 1 : index
    %c0_15 = arith.constant 0 : index
    %c0_16 = arith.constant 0 : index
    %21 = vector.load %arg3[%c1_14, %c0_15, %c0_16] : memref<3x128x128xbf16, #tpu.memory_space<vmem>>, vector<1x128x128xbf16>
    %22 = vector.shape_cast %21 : vector<1x128x128xbf16> to vector<128x128xbf16>
    %cst_17 = arith.constant dense<0.000000e+00> : vector<8x128xf32>
    %23 = tpu.matmul %20, %22, %cst_17 {dimension_numbers = #tpu.dot_dimension_numbers<[1], [0], [0], [1], [0, 0, 1, 1], [], []>} : vector<8x128xbf16>, vector<128x128xbf16>, vector<8x128xf32> -> vector<8x128xf32>
    %c2 = arith.constant 2 : index
    %c0_18 = arith.constant 0 : index
    %c0_19 = arith.constant 0 : index
    %24 = vector.load %arg5[%c2, %c0_18, %c0_19] : memref<4x1x128xf32, #tpu.memory_space<vmem>>, vector<1x1x128xf32>
    %25 = vector.shape_cast %24 : vector<1x1x128xf32> to vector<1x128xf32>
    %26 = vector.broadcast %25 : vector<1x128xf32> to vector<8x128xf32>
    %27 = arith.addf %23, %26 : vector<8x128xf32>
    %cst_20 = arith.constant 0.000000e+00 : f32
    %28 = vector.broadcast %cst_20 : f32 to vector<8x128xf32>
    %29 = arith.maximumf %27, %28 : vector<8x128xf32>
    %30 = arith.truncf %29 : vector<8x128xf32> to vector<8x128xbf16>
    %c2_21 = arith.constant 2 : index
    %c0_22 = arith.constant 0 : index
    %c0_23 = arith.constant 0 : index
    %31 = vector.load %arg3[%c2_21, %c0_22, %c0_23] : memref<3x128x128xbf16, #tpu.memory_space<vmem>>, vector<1x128x128xbf16>
    %32 = vector.shape_cast %31 : vector<1x128x128xbf16> to vector<128x128xbf16>
    %cst_24 = arith.constant dense<0.000000e+00> : vector<8x128xf32>
    %33 = tpu.matmul %30, %32, %cst_24 {dimension_numbers = #tpu.dot_dimension_numbers<[1], [0], [0], [1], [0, 0, 1, 1], [], []>} : vector<8x128xbf16>, vector<128x128xbf16>, vector<8x128xf32> -> vector<8x128xf32>
    %c3 = arith.constant 3 : index
    %c0_25 = arith.constant 0 : index
    %c0_26 = arith.constant 0 : index
    %34 = vector.load %arg5[%c3, %c0_25, %c0_26] : memref<4x1x128xf32, #tpu.memory_space<vmem>>, vector<1x1x128xf32>
    %35 = vector.shape_cast %34 : vector<1x1x128xf32> to vector<1x128xf32>
    %36 = vector.broadcast %35 : vector<1x128xf32> to vector<8x128xf32>
    %37 = arith.addf %33, %36 : vector<8x128xf32>
    %cst_27 = arith.constant 0.000000e+00 : f32
    %38 = vector.broadcast %cst_27 : f32 to vector<8x128xf32>
    %39 = arith.maximumf %37, %38 : vector<8x128xf32>
    %40 = arith.truncf %39 : vector<8x128xf32> to vector<8x128xbf16>
    %c0_28 = arith.constant 0 : index
    %c0_29 = arith.constant 0 : index
    %41 = vector.load %arg4[%c0_28, %c0_29] : memref<128x128xbf16, #tpu.memory_space<vmem>>, vector<128x128xbf16>
    %cst_30 = arith.constant dense<0.000000e+00> : vector<8x128xf32>
    %42 = tpu.matmul %40, %41, %cst_30 {dimension_numbers = #tpu.dot_dimension_numbers<[1], [0], [0], [1], [0, 0, 1, 1], [], []>} : vector<8x128xbf16>, vector<128x128xbf16>, vector<8x128xf32> -> vector<8x128xf32>
    %c0_31 = arith.constant 0 : index
    %c0_32 = arith.constant 0 : index
    %43 = vector.load %arg6[%c0_31, %c0_32] : memref<1x128xf32, #tpu.memory_space<vmem>>, vector<1x128xf32>
    %44 = vector.broadcast %43 : vector<1x128xf32> to vector<8x128xf32>
    %45 = arith.addf %42, %44 : vector<8x128xf32>
    %46 = tpu.iota {dimensions = array<i32: 1>} : vector<8x128xi32>
    %c4_i32 = arith.constant 4 : i32
    %47 = vector.broadcast %c4_i32 : i32 to vector<8x128xi32>
    %48 = arith.cmpi sge, %46, %47 : vector<8x128xi32>
    %cst_33 = arith.constant -2.000000e+01 : f32
    %cst_34 = arith.constant 2.000000e+00 : f32
    %49 = vector.broadcast %cst_33 : f32 to vector<8x128xf32>
    %50 = arith.maximumf %49, %45 : vector<8x128xf32>
    %51 = vector.broadcast %cst_34 : f32 to vector<8x128xf32>
    %52 = arith.minimumf %51, %50 : vector<8x128xf32>
    %53 = arith.select %48, %52, %45 : vector<8x128xi1>, vector<8x128xf32>
    %c0_35 = arith.constant 0 : index
    %c0_36 = arith.constant 0 : index
    %54 = vector.load %arg7[%c0_35, %c0_36] : memref<8x128xf32, #tpu.memory_space<vmem>>, vector<8x128xf32>
    tpu.vector_store %arg7[%c0_35, %c0_36], %53 {strides = array<i32>} : memref<8x128xf32, #tpu.memory_space<vmem>>, vector<8x128xf32>,
    return
  }
  func.func @transform_0(%arg0: i32) -> (i32, i32) {
    %c0_i32 = arith.constant 0 : i32
    %c0_i32_0 = arith.constant 0 : i32
    return %arg0, %c0_i32 : i32, i32
  }
  func.func @transform_1(%arg0: i32) -> (i32, i32) {
    %c0_i32 = arith.constant 0 : i32
    %c0_i32_0 = arith.constant 0 : i32
    %c0_i32_1 = arith.constant 0 : i32
    return %c0_i32, %c0_i32_0 : i32, i32
  }
  func.func @transform_2(%arg0: i32) -> (i32, i32, i32) {
    %c0_i32 = arith.constant 0 : i32
    %c0_i32_0 = arith.constant 0 : i32
    %c0_i32_1 = arith.constant 0 : i32
    %c0_i32_2 = arith.constant 0 : i32
    return %c0_i32, %c0_i32_0, %c0_i32_1 : i32, i32, i32
  }
  func.func @transform_3(%arg0: i32) -> (i32, i32) {
    %c0_i32 = arith.constant 0 : i32
    %c0_i32_0 = arith.constant 0 : i32
    %c0_i32_1 = arith.constant 0 : i32
    return %c0_i32, %c0_i32_0 : i32, i32
  }
  func.func @transform_4(%arg0: i32) -> (i32, i32, i32) {
    %c0_i32 = arith.constant 0 : i32
    %c0_i32_0 = arith.constant 0 : i32
    %c0_i32_1 = arith.constant 0 : i32
    %c0_i32_2 = arith.constant 0 : i32
    return %c0_i32, %c0_i32_0, %c0_i32_1 : i32, i32, i32
  }
  func.func @transform_5(%arg0: i32) -> (i32, i32) {
    %c0_i32 = arith.constant 0 : i32
    %c0_i32_0 = arith.constant 0 : i32
    %c0_i32_1 = arith.constant 0 : i32
    return %c0_i32, %c0_i32_0 : i32, i32
  }
  func.func @transform_6(%arg0: i32) -> (i32, i32) {
    %c0_i32 = arith.constant 0 : i32
    %c0_i32_0 = arith.constant 0 : i32
    return %arg0, %c0_i32 : i32, i32
  }
}

module attributes {stable_mosaic.version = 11 : i64} {
  func.func @_policy_mlp_kernel(%arg0: i32, %arg1: memref<8x128xf32, #tpu.memory_space<vmem>>, %arg2: memref<128x128xbf16, #tpu.memory_space<vmem>>, %arg3: memref<3x128x128xbf16, #tpu.memory_space<vmem>>, %arg4: memref<128x128xbf16, #tpu.memory_space<vmem>>, %arg5: memref<4x1x128xf32, #tpu.memory_space<vmem>>, %arg6: memref<1x128xf32, #tpu.memory_space<vmem>>, %arg7: memref<8x128xf32, #tpu.memory_space<vmem>>) attributes {dimension_semantics = [#tpu.dimension_semantics<parallel>], iteration_bounds = array<i64: 1>, scalar_prefetch = 0 : i64, scratch_operands = 0 : i64, tpu.core_type = #tpu.core_type<tc>, window_params = [{transform_indices = @transform_0, window_bounds = array<i64: 8, 128>}, {pipeline_mode = #tpu.pipeline_mode<synchronous>, transform_indices = @transform_1, window_bounds = array<i64: 128, 128>}, {pipeline_mode = #tpu.pipeline_mode<synchronous>, transform_indices = @transform_2, window_bounds = array<i64: 3, 128, 128>}, {pipeline_mode = #tpu.pipeline_mode<synchronous>, transform_indices = @transform_3, window_bounds = array<i64: 128, 128>}, {pipeline_mode = #tpu.pipeline_mode<synchronous>, transform_indices = @transform_4, window_bounds = array<i64: 4, 1, 128>}, {pipeline_mode = #tpu.pipeline_mode<synchronous>, transform_indices = @transform_5, window_bounds = array<i64: 1, 128>}, {transform_indices = @transform_6, window_bounds = array<i64: 8, 128>}]} {
    %c0 = arith.constant 0 : index
    %c0_0 = arith.constant 0 : index
    %0 = vector.load %arg1[%c0, %c0_0] : memref<8x128xf32, #tpu.memory_space<vmem>>, vector<8x128xf32>
    %1 = arith.truncf %0 : vector<8x128xf32> to vector<8x128xbf16>
    %c0_1 = arith.constant 0 : index
    %c0_2 = arith.constant 0 : index
    %2 = vector.load %arg2[%c0_1, %c0_2] : memref<128x128xbf16, #tpu.memory_space<vmem>>, vector<128x128xbf16>
    %cst = arith.constant dense<0.000000e+00> : vector<8x128xf32>
    %3 = tpu.matmul %1, %2, %cst {dimension_numbers = #tpu.dot_dimension_numbers<[1], [0], [0], [1], [0, 0, 1, 1], [], []>} : vector<8x128xbf16>, vector<128x128xbf16>, vector<8x128xf32> -> vector<8x128xf32>
    %c0_3 = arith.constant 0 : index
    %c0_4 = arith.constant 0 : index
    %c0_5 = arith.constant 0 : index
    %4 = vector.load %arg5[%c0_3, %c0_4, %c0_5] : memref<4x1x128xf32, #tpu.memory_space<vmem>>, vector<1x1x128xf32>
    %5 = vector.shape_cast %4 : vector<1x1x128xf32> to vector<1x128xf32>
    %6 = vector.broadcast %5 : vector<1x128xf32> to vector<8x128xf32>
    %7 = arith.addf %3, %6 : vector<8x128xf32>
    %cst_6 = arith.constant 0.000000e+00 : f32
    %8 = vector.broadcast %cst_6 : f32 to vector<8x128xf32>
    %9 = arith.maximumf %7, %8 : vector<8x128xf32>
    %10 = arith.truncf %9 : vector<8x128xf32> to vector<8x128xbf16>
    %c0_7 = arith.constant 0 : index
    %c0_8 = arith.constant 0 : index
    %c0_9 = arith.constant 0 : index
    %11 = vector.load %arg3[%c0_7, %c0_8, %c0_9] : memref<3x128x128xbf16, #tpu.memory_space<vmem>>, vector<1x128x128xbf16>
    %12 = vector.shape_cast %11 : vector<1x128x128xbf16> to vector<128x128xbf16>
    %cst_10 = arith.constant dense<0.000000e+00> : vector<8x128xf32>
    %13 = tpu.matmul %10, %12, %cst_10 {dimension_numbers = #tpu.dot_dimension_numbers<[1], [0], [0], [1], [0, 0, 1, 1], [], []>} : vector<8x128xbf16>, vector<128x128xbf16>, vector<8x128xf32> -> vector<8x128xf32>
    %c1 = arith.constant 1 : index
    %c0_11 = arith.constant 0 : index
    %c0_12 = arith.constant 0 : index
    %14 = vector.load %arg5[%c1, %c0_11, %c0_12] : memref<4x1x128xf32, #tpu.memory_space<vmem>>, vector<1x1x128xf32>
    %15 = vector.shape_cast %14 : vector<1x1x128xf32> to vector<1x128xf32>
    %16 = vector.broadcast %15 : vector<1x128xf32> to vector<8x128xf32>
    %17 = arith.addf %13, %16 : vector<8x128xf32>
    %cst_13 = arith.constant 0.000000e+00 : f32
    %18 = vector.broadcast %cst_13 : f32 to vector<8x128xf32>
    %19 = arith.maximumf %17, %18 : vector<8x128xf32>
    %20 = arith.truncf %19 : vector<8x128xf32> to vector<8x128xbf16>
    %c1_14 = arith.constant 1 : index
    %c0_15 = arith.constant 0 : index
    %c0_16 = arith.constant 0 : index
    %21 = vector.load %arg3[%c1_14, %c0_15, %c0_16] : memref<3x128x128xbf16, #tpu.memory_space<vmem>>, vector<1x128x128xbf16>
    %22 = vector.shape_cast %21 : vector<1x128x128xbf16> to vector<128x128xbf16>
    %cst_17 = arith.constant dense<0.000000e+00> : vector<8x128xf32>
    %23 = tpu.matmul %20, %22, %cst_17 {dimension_numbers = #tpu.dot_dimension_numbers<[1], [0], [0], [1], [0, 0, 1, 1], [], []>} : vector<8x128xbf16>, vector<128x128xbf16>, vector<8x128xf32> -> vector<8x128xf32>
    %c2 = arith.constant 2 : index
    %c0_18 = arith.constant 0 : index
    %c0_19 = arith.constant 0 : index
    %24 = vector.load %arg5[%c2, %c0_18, %c0_19] : memref<4x1x128xf32, #tpu.memory_space<vmem>>, vector<1x1x128xf32>
    %25 = vector.shape_cast %24 : vector<1x1x128xf32> to vector<1x128xf32>
    %26 = vector.broadcast %25 : vector<1x128xf32> to vector<8x128xf32>
    %27 = arith.addf %23, %26 : vector<8x128xf32>
    %cst_20 = arith.constant 0.000000e+00 : f32
    %28 = vector.broadcast %cst_20 : f32 to vector<8x128xf32>
    %29 = arith.maximumf %27, %28 : vector<8x128xf32>
    %30 = arith.truncf %29 : vector<8x128xf32> to vector<8x128xbf16>
    %c2_21 = arith.constant 2 : index
    %c0_22 = arith.constant 0 : index
    %c0_23 = arith.constant 0 : index
    %31 = vector.load %arg3[%c2_21, %c0_22, %c0_23] : memref<3x128x128xbf16, #tpu.memory_space<vmem>>, vector<1x128x128xbf16>
    %32 = vector.shape_cast %31 : vector<1x128x128xbf16> to vector<128x128xbf16>
    %cst_24 = arith.constant dense<0.000000e+00> : vector<8x128xf32>
    %33 = tpu.matmul %30, %32, %cst_24 {dimension_numbers = #tpu.dot_dimension_numbers<[1], [0], [0], [1], [0, 0, 1, 1], [], []>} : vector<8x128xbf16>, vector<128x128xbf16>, vector<8x128xf32> -> vector<8x128xf32>
    %c3 = arith.constant 3 : index
    %c0_25 = arith.constant 0 : index
    %c0_26 = arith.constant 0 : index
    %34 = vector.load %arg5[%c3, %c0_25, %c0_26] : memref<4x1x128xf32, #tpu.memory_space<vmem>>, vector<1x1x128xf32>
    %35 = vector.shape_cast %34 : vector<1x1x128xf32> to vector<1x128xf32>
    %36 = vector.broadcast %35 : vector<1x128xf32> to vector<8x128xf32>
    %37 = arith.addf %33, %36 : vector<8x128xf32>
    %cst_27 = arith.constant 0.000000e+00 : f32
    %38 = vector.broadcast %cst_27 : f32 to vector<8x128xf32>
    %39 = arith.maximumf %37, %38 : vector<8x128xf32>
    %40 = arith.truncf %39 : vector<8x128xf32> to vector<8x128xbf16>
    %c0_28 = arith.constant 0 : index
    %c0_29 = arith.constant 0 : index
    %41 = vector.load %arg4[%c0_28, %c0_29] : memref<128x128xbf16, #tpu.memory_space<vmem>>, vector<128x128xbf16>
    %cst_30 = arith.constant dense<0.000000e+00> : vector<8x128xf32>
    %42 = tpu.matmul %40, %41, %cst_30 {dimension_numbers = #tpu.dot_dimension_numbers<[1], [0], [0], [1], [0, 0, 1, 1], [], []>} : vector<8x128xbf16>, vector<128x128xbf16>, vector<8x128xf32> -> vector<8x128xf32>
    %c0_31 = arith.constant 0 : index
    %c0_32 = arith.constant 0 : index
    %43 = vector.load %arg6[%c0_31, %c0_32] : memref<1x128xf32, #tpu.memory_space<vmem>>, vector<1x128xf32>
    %44 = vector.broadcast %43 : vector<1x128xf32> to vector<8x128xf32>
    %45 = arith.addf %42, %44 : vector<8x128xf32>
    %46 = tpu.iota {dimensions = array<i32: 1>} : vector<8x128xi32>
    %c4_i32 = arith.constant 4 : i32
    %47 = vector.broadcast %c4_i32 : i32 to vector<8x128xi32>
    %48 = arith.cmpi sge, %46, %47 : vector<8x128xi32>
    %cst_33 = arith.constant -2.000000e+01 : f32
    %cst_34 = arith.constant 2.000000e+00 : f32
    %49 = vector.broadcast %cst_33 : f32 to vector<8x128xf32>
    %50 = arith.maximumf %49, %45 : vector<8x128xf32>
    %51 = vector.broadcast %cst_34 : f32 to vector<8x128xf32>
    %52 = arith.minimumf %51, %50 : vector<8x128xf32>
    %53 = arith.select %48, %52, %45 : vector<8x128xi1>, vector<8x128xf32>
    %c0_35 = arith.constant 0 : index
    %c0_36 = arith.constant 0 : index
    %54 = vector.load %arg7[%c0_35, %c0_36] : memref<8x128xf32, #tpu.memory_space<vmem>>, vector<8x128xf32>
    tpu.vector_store %arg7[%c0_35, %c0_36], %53 {strides = array<i32>} : memref<8x128xf32, #tpu.memory_space<vmem>>, vector<8x128xf32>,
    return
  }
  func.func @transform_0(%arg0: i32) -> (i32, i32) {
    %c0_i32 = arith.constant 0 : i32
    %c0_i32_0 = arith.constant 0 : i32
    return %arg0, %c0_i32 : i32, i32
  }
  func.func @transform_1(%arg0: i32) -> (i32, i32) {
    %c0_i32 = arith.constant 0 : i32
    %c0_i32_0 = arith.constant 0 : i32
    %c0_i32_1 = arith.constant 0 : i32
    return %c0_i32, %c0_i32_0 : i32, i32
  }
  func.func @transform_2(%arg0: i32) -> (i32, i32, i32) {
    %c0_i32 = arith.constant 0 : i32
    %c0_i32_0 = arith.constant 0 : i32
    %c0_i32_1 = arith.constant 0 : i32
    %c0_i32_2 = arith.constant 0 : i32
    return %c0_i32, %c0_i32_0, %c0_i32_1 : i32, i32, i32
  }
  func.func @transform_3(%arg0: i32) -> (i32, i32) {
    %c0_i32 = arith.constant 0 : i32
    %c0_i32_0 = arith.constant 0 : i32
    %c0_i32_1 = arith.constant 0 : i32
    return %c0_i32, %c0_i32_0 : i32, i32
  }
  func.func @transform_4(%arg0: i32) -> (i32, i32, i32) {
    %c0_i32 = arith.constant 0 : i32
    %c0_i32_0 = arith.constant 0 : i32
    %c0_i32_1 = arith.constant 0 : i32
    %c0_i32_2 = arith.constant 0 : i32
    return %c0_i32, %c0_i32_0, %c0_i32_1 : i32, i32, i32
  }
  func.func @transform_5(%arg0: i32) -> (i32, i32) {
    %c0_i32 = arith.constant 0 : i32
    %c0_i32_0 = arith.constant 0 : i32
    %c0_i32_1 = arith.constant 0 : i32
    return %c0_i32, %c0_i32_0 : i32, i32
  }
  func.func @transform_6(%arg0: i32) -> (i32, i32) {
    %c0_i32 = arith.constant 0 : i32
    %c0_i32_0 = arith.constant 0 : i32
    return %arg0, %c0_i32 : i32, i32
  }
}

</mosaic_0001>

<llo_original>
// kernel: tpu_custom_call.1
$region0: #{tpu_custom_call.1}
  #allocation0 [shape = 'u32[]', space=smem, size = 0x4, offset = 0x4, fixed_abs, tag = 'smem constant byte address 0x4 - core index']
  #allocation1 [shape = 'u32[144,128]{1,0:T(1,128)}', space=vmem, size = 0x12000, scoped, tag = 'internal scratch']
  %s0 = inlined_call_operand.hbm [shape: f32[8,128], index: 0, kind: input, shape index: {}]
  %s1 = inlined_call_operand.hbm [shape: bf16[128,128], index: 1, kind: input, shape index: {}]
  %s2 = inlined_call_operand.hbm [shape: bf16[3,128,128], index: 2, kind: input, shape index: {}]
  %s3 = inlined_call_operand.hbm [shape: bf16[128,128], index: 3, kind: input, shape index: {}]
  %s4 = inlined_call_operand.vmem [shape: f32[4,1,128], index: 4, kind: input, shape index: {}]
  %s5 = inlined_call_operand.vmem [shape: f32[1,128], index: 5, kind: input, shape index: {}]
  %s6 = inlined_call_operand.hbm [shape: f32[8,128], index: 6, kind: output, shape index: {}]
  %s7 = sld [smem:[#allocation0]]
  $region50: #{tpu_custom_call.1} parent=0
    _
  %s9 = ssub.s32 1, %s7
  %s10 = scalar_select 0, %s9, %s7
  $region1: #{tpu_custom_call.1} parent=0
    #allocation2 [shape = 'u8[4096]{0}', space=vmem, size = 0x1000, scoped, tag = 'input window, operand 0, single buffered']
    #allocation3 [shape = 's32[1]{0}', space=sflag, size = 0x4, scoped, tag = 'scoped memory for tpu_custom_call.1']
    #allocation4 [shape = 's32[1]{0}', space=sflag, size = 0x4, scoped, tag = 'scoped memory for tpu_custom_call.1']
    #allocation5 [shape = 'u8[32768]{0}', space=vmem, size = 0x8000, scoped, tag = 'input window, operand 1, single buffered']
    #allocation6 [shape = 's32[1]{0}', space=sflag, size = 0x4, scoped, tag = 'scoped memory for tpu_custom_call.1']
    #allocation7 [shape = 'u8[98304]{0}', space=vmem, size = 0x18000, scoped, tag = 'input window, operand 2, single buffered']
    #allocation8 [shape = 'u8[32768]{0}', space=vmem, size = 0x8000, scoped, tag = 'input window, operand 3, single buffered']
    #allocation9 [shape = 's32[1]{0}', space=sflag, size = 0x4, scoped, tag = 'scoped memory for tpu_custom_call.1']
    #allocation10 [shape = 'u8[4096]{0}', space=vmem, size = 0x1000, scoped, tag = 'output window, operand 0, single buffered']
    %11 = vsyncpa [#allocation3], 0
    %12 = vsyncpa [#allocation6], 0
    %13 = vsyncpa [#allocation9], 0
    %14 = vsyncpa [#allocation4], 0
    // Predicated region
    $region2: #{tpu_custom_call.1} parent=1 // pred_check
      _
    $region3: #{tpu_custom_call.1} parent=1 // pred_check_branch
      %16 = sbr.rel (0) target = $region5
    $region4: #{tpu_custom_call.1} parent=1 // pred_region
      %s18 = ssub.s32 128, 128
      %19 = vsyncadd [#allocation3], %s18
      %s21 = sshll.u32 [#allocation2], 4
      %s22 = int_to_ptr.vmem [resolvable:$true] %s21
      %24 = dma.hbm_to_vmem [thread:$0]  %s0, 128, %s22, [#allocation3]
    $region5: #{tpu_custom_call.1} parent=1 // pred_fallthru
      _
    // Predicated region
    $region6: #{tpu_custom_call.1} parent=1 // pred_check
      _
    $region7: #{tpu_custom_call.1} parent=1 // pred_check_branch
      %26 = sbr.rel (0) target = $region9
    $region8: #{tpu_custom_call.1} parent=1 // pred_region
      %s28 = ssub.s32 1024, 1024
      %29 = vsyncadd [#allocation6], %s28
      %s30 = sshll.u32 [#allocation5], 4
      %s31 = int_to_ptr.vmem [resolvable:$true] %s30
      %36 = dma.hbm_to_vmem [thread:$0]  %s1, 1024, %s31, [#allocation6], 64, 64, 4
    $region9: #{tpu_custom_call.1} parent=1 // pred_fallthru
      _
    // Predicated region
    $region10: #{tpu_custom_call.1} parent=1 // pred_check
      _
    $region11: #{tpu_custom_call.1} parent=1 // pred_check_branch
      %38 = sbr.rel (0) target = $region13
    $region12: #{tpu_custom_call.1} parent=1 // pred_region
      %s40 = ssub.s32 3072, 3072
      %41 = vsyncadd [#allocation6], %s40
      %s42 = sshll.u32 [#allocation7], 4
      %s43 = int_to_ptr.vmem [resolvable:$true] %s42
      %48 = dma.hbm_to_vmem [thread:$0]  %s2, 3072, %s43, [#allocation6], 64, 64, 4
    $region13: #{tpu_custom_call.1} parent=1 // pred_fallthru
      _
    // Predicated region
    $region14: #{tpu_custom_call.1} parent=1 // pred_check
      _
    $region15: #{tpu_custom_call.1} parent=1 // pred_check_branch
      %50 = sbr.rel (0) target = $region17
    $region16: #{tpu_custom_call.1} parent=1 // pred_region
      %s52 = ssub.s32 1024, 1024
      %53 = vsyncadd [#allocation9], %s52
      %s54 = sshll.u32 [#allocation8], 4
      %s55 = int_to_ptr.vmem [resolvable:$true] %s54
      %60 = dma.hbm_to_vmem [thread:$0]  %s3, 1024, %s55, [#allocation9], 64, 64, 4
    $region17: #{tpu_custom_call.1} parent=1 // pred_fallthru
      _
    // Predicated region
    $region18: #{tpu_custom_call.1} parent=1 // pred_check
      _
    $region19: #{tpu_custom_call.1} parent=1 // pred_check_branch
      %62 = sbr.rel (0) target = $region21
    $region20: #{tpu_custom_call.1} parent=1 // pred_region
      _
    $region21: #{tpu_custom_call.1} parent=1 // pred_fallthru
      _
    // Predicated region
    $region22: #{tpu_custom_call.1} parent=1 // pred_check
      _
    $region23: #{tpu_custom_call.1} parent=1 // pred_check_branch
      %64 = sbr.rel (0) target = $region25
    $region24: #{tpu_custom_call.1} parent=1 // pred_region
      _
    $region25: #{tpu_custom_call.1} parent=1 // pred_fallthru
      _
    // Predicated region
    $region26: #{tpu_custom_call.1} parent=1 // pred_check
      _
    $region27: #{tpu_custom_call.1} parent=1 // pred_check_branch
      %66 = sbr.rel (0) target = $region29
    $region28: #{tpu_custom_call.1} parent=1 // pred_region
      %67 = dma.done [#allocation3], 128
    $region29: #{tpu_custom_call.1} parent=1 // pred_fallthru
      _
    // Predicated region
    $region30: #{tpu_custom_call.1} parent=1 // pred_check
      _
    $region31: #{tpu_custom_call.1} parent=1 // pred_check_branch
      %69 = sbr.rel (0) target = $region33
    $region32: #{tpu_custom_call.1} parent=1 // pred_region
      %70 = dma.done [#allocation6], 1024
    $region33: #{tpu_custom_call.1} parent=1 // pred_fallthru
      _
    // Predicated region
    $region34: #{tpu_custom_call.1} parent=1 // pred_check
      _
    $region35: #{tpu_custom_call.1} parent=1 // pred_check_branch
      %72 = sbr.rel (0) target = $region37
    $region36: #{tpu_custom_call.1} parent=1 // pred_region
      %73 = dma.done [#allocation6], 3072
    $region37: #{tpu_custom_call.1} parent=1 // pred_fallthru
      _
    // Predicated region
    $region38: #{tpu_custom_call.1} parent=1 // pred_check
      _
    $region39: #{tpu_custom_call.1} parent=1 // pred_check_branch
      %75 = sbr.rel (0) target = $region41
    $region40: #{tpu_custom_call.1} parent=1 // pred_region
      %76 = dma.done [#allocation9], 1024
    $region41: #{tpu_custom_call.1} parent=1 // pred_fallthru
      _
    %v78 = vld [vmem:[#allocation2] sm:$0xff]
    %v79 = vpack.c.bf16 %v78, %v78
    %v80 = vld [vmem:[#allocation5] sm:$0xf]
    %v81 = vld [vmem:[#allocation5 + $0x4] sm:$0xf]
    %v82 = vld [vmem:[#allocation5 + $0x8] sm:$0xf]
    %v83 = vld [vmem:[#allocation5 + $0xc] sm:$0xf]
    %v84 = vld [vmem:[#allocation5 + $0x10] sm:$0xf]
    %v85 = vld [vmem:[#allocation5 + $0x14] sm:$0xf]
    %v86 = vld [vmem:[#allocation5 + $0x18] sm:$0xf]
    %v87 = vld [vmem:[#allocation5 + $0x1c] sm:$0xf]
    %v88 = vld [vmem:[#allocation5 + $0x20] sm:$0xf]
    %v89 = vld [vmem:[#allocation5 + $0x24] sm:$0xf]
    %v90 = vld [vmem:[#allocation5 + $0x28] sm:$0xf]
    %v91 = vld [vmem:[#allocation5 + $0x2c] sm:$0xf]
    %v92 = vld [vmem:[#allocation5 + $0x30] sm:$0xf]
    %v93 = vld [vmem:[#allocation5 + $0x34] sm:$0xf]
    %v94 = vld [vmem:[#allocation5 + $0x38] sm:$0xf]
    %v95 = vld [vmem:[#allocation5 + $0x3c] sm:$0xf]
    %v96 = vld [vmem:[%s4] sm:$0x1]
    %v98 = vlaneseq
    %v99 = vshrl.u32 %v98, 7
    %v100 = vsub.s32 0, %v99
    %v101 = vrot.slane %v96, %v100
    %v119 = vunpack.c.l.b16 %v80
    %v120 = vunpack.c.l.b16 %v81
    %v121 = vunpack.c.l.b16 %v82
    %v122 = vunpack.c.l.b16 %v83
    %v123 = vunpack.c.l.b16 %v84
    %v124 = vunpack.c.l.b16 %v85
    %v125 = vunpack.c.l.b16 %v86
    %v126 = vunpack.c.l.b16 %v87
    %v127 = vunpack.c.l.b16 %v88
    %v128 = vunpack.c.l.b16 %v89
    %v129 = vunpack.c.l.b16 %v90
    %v130 = vunpack.c.l.b16 %v91
    %v131 = vunpack.c.l.b16 %v92
    %v132 = vunpack.c.l.b16 %v93
    %v133 = vunpack.c.l.b16 %v94
    %v134 = vunpack.c.l.b16 %v95
    %v135 = vpack.c.b16 %v120, %v119
    %v136 = vpack.c.b16 %v122, %v121
    %v137 = vpack.c.b16 %v124, %v123
    %v138 = vpack.c.b16 %v126, %v125
    %v139 = vpack.c.b16 %v128, %v127
    %v140 = vpack.c.b16 %v130, %v129
    %v141 = vpack.c.b16 %v132, %v131
    %v142 = vpack.c.b16 %v134, %v133
    %151 = vmatprep.subr.bf16.mxu0 0
    %152 = vmatpush1.bf16.msra.mxu0 %v135
    %153 = vmatprep.subr.bf16.mxu0 0
    %154 = vmatpush1.bf16.msra.mxu0 %v136
    %155 = vmatprep.subr.bf16.mxu0 0
    %156 = vmatpush1.bf16.msra.mxu0 %v137
    %157 = vmatprep.subr.bf16.mxu0 0
    %158 = vmatpush1.bf16.msra.mxu0 %v138
    %159 = vmatprep.subr.bf16.mxu0 0
    %160 = vmatpush1.bf16.msra.mxu0 %v139
    %161 = vmatprep.subr.bf16.mxu0 0
    %162 = vmatpush1.bf16.msra.mxu0 %v140
    %163 = vmatprep.subr.bf16.mxu0 0
    %164 = vmatpush1.bf16.msra.mxu0 %v141
    %165 = vmatprep.subr.bf16.mxu0 0
    %166 = vmatpush1.bf16.msra.mxu0 %v142
    %167 = vmatprep.subr.bf16.mxu0 0
    %168 = vmatpush1.bf16.msra.mxu0 0
    %169 = vmatprep.subr.bf16.mxu0 0
    %170 = vmatpush1.bf16.msra.mxu0 0
    %171 = vmatprep.subr.bf16.mxu0 0
    %172 = vmatpush1.bf16.msra.mxu0 0
    %173 = vmatprep.subr.bf16.mxu0 0
    %174 = vmatpush1.bf16.msra.mxu0 0
    %175 = vmatprep.subr.bf16.mxu0 0
    %176 = vmatpush1.bf16.msra.mxu0 0
    %177 = vmatprep.subr.bf16.mxu0 0
    %178 = vmatpush1.bf16.msra.mxu0 0
    %179 = vmatprep.subr.bf16.mxu0 0
    %180 = vmatpush1.bf16.msra.mxu0 0
    %181 = vmatprep.subr.bf16.mxu0 0
    %182 = vmatpush1.bf16.msra.mxu0 0
    %183 = vmatprep.mubr.bf16.mxu0 0
    %184 = vmatmul.mubr.bf16.gmra.mrb[0].mxu0 %v79
    %v185 = vpop.f32.mrb[0].mxu0
    %v186 = vadd.f32 %v101, %v185
    %v187 = vpop.f32.mrb[0].mxu0
    %v188 = vpop.f32.mrb[0].mxu0
    %v189 = vpop.f32.mrb[0].mxu0
    %190 = vdwg.mxu0
    %v191 = vmax.f32 %v186, 0.0
    %v192 = vpack.c.bf16 %v191, %v191
    %v193 = vld [vmem:[#allocation7] sm:$0xf]
    %v194 = vld [vmem:[#allocation7 + $0x4] sm:$0xf]
    %v195 = vld [vmem:[#allocation7 + $0x8] sm:$0xf]
    %v196 = vld [vmem:[#allocation7 + $0xc] sm:$0xf]
    %v197 = vld [vmem:[#allocation7 + $0x10] sm:$0xf]
    %v198 = vld [vmem:[#allocation7 + $0x14] sm:$0xf]
    %v199 = vld [vmem:[#allocation7 + $0x18] sm:$0xf]
    %v200 = vld [vmem:[#allocation7 + $0x1c] sm:$0xf]
    %v201 = vld [vmem:[#allocation7 + $0x20] sm:$0xf]
    %v202 = vld [vmem:[#allocation7 + $0x24] sm:$0xf]
    %v203 = vld [vmem:[#allocation7 + $0x28] sm:$0xf]
    %v204 = vld [vmem:[#allocation7 + $0x2c] sm:$0xf]
    %v205 = vld [vmem:[#allocation7 + $0x30] sm:$0xf]
    %v206 = vld [vmem:[#allocation7 + $0x34] sm:$0xf]
    %v207 = vld [vmem:[#allocation7 + $0x38] sm:$0xf]
    %v208 = vld [vmem:[#allocation7 + $0x3c] sm:$0xf]
    %s209 = scalar_lea.vmem %s4, 1
    %v210 = vld [vmem:[%s209] sm:$0x1]
    %v212 = vlaneseq
    %v213 = vshrl.u32 %v212, 7
    %v214 = vsub.s32 0, %v213
    %v215 = vrot.slane %v210, %v214
    %v233 = vunpack.c.l.b16 %v193
    %v234 = vunpack.c.l.b16 %v194
    %v235 = vunpack.c.l.b16 %v195
    %v236 = vunpack.c.l.b16 %v196
    %v237 = vunpack.c.l.b16 %v197
    %v238 = vunpack.c.l.b16 %v198
    %v239 = vunpack.c.l.b16 %v199
    %v240 = vunpack.c.l.b16 %v200
    %v241 = vunpack.c.l.b16 %v201
    %v242 = vunpack.c.l.b16 %v202
    %v243 = vunpack.c.l.b16 %v203
    %v244 = vunpack.c.l.b16 %v204
    %v245 = vunpack.c.l.b16 %v205
    %v246 = vunpack.c.l.b16 %v206
    %v247 = vunpack.c.l.b16 %v207
    %v248 = vunpack.c.l.b16 %v208
    %v249 = vpack.c.b16 %v234, %v233
    %v250 = vpack.c.b16 %v236, %v235
    %v251 = vpack.c.b16 %v238, %v237
    %v252 = vpack.c.b16 %v240, %v239
    %v253 = vpack.c.b16 %v242, %v241
    %v254 = vpack.c.b16 %v244, %v243
    %v255 = vpack.c.b16 %v246, %v245
    %v256 = vpack.c.b16 %v248, %v247
    %265 = vmatprep.subr.bf16.mxu0 0
    %266 = vmatpush1.bf16.msra.mxu0 %v249
    %267 = vmatprep.subr.bf16.mxu0 0
    %268 = vmatpush1.bf16.msra.mxu0 %v250
    %269 = vmatprep.subr.bf16.mxu0 0
    %270 = vmatpush1.bf16.msra.mxu0 %v251
    %271 = vmatprep.subr.bf16.mxu0 0
    %272 = vmatpush1.bf16.msra.mxu0 %v252
    %273 = vmatprep.subr.bf16.mxu0 0
    %274 = vmatpush1.bf16.msra.mxu0 %v253
    %275 = vmatprep.subr.bf16.mxu0 0
    %276 = vmatpush1.bf16.msra.mxu0 %v254
    %277 = vmatprep.subr.bf16.mxu0 0
    %278 = vmatpush1.bf16.msra.mxu0 %v255
    %279 = vmatprep.subr.bf16.mxu0 0
    %280 = vmatpush1.bf16.msra.mxu0 %v256
    %281 = vmatprep.subr.bf16.mxu0 0
    %282 = vmatpush1.bf16.msra.mxu0 0
    %283 = vmatprep.subr.bf16.mxu0 0
    %284 = vmatpush1.bf16.msra.mxu0 0
    %285 = vmatprep.subr.bf16.mxu0 0
    %286 = vmatpush1.bf16.msra.mxu0 0
    %287 = vmatprep.subr.bf16.mxu0 0
    %288 = vmatpush1.bf16.msra.mxu0 0
    %289 = vmatprep.subr.bf16.mxu0 0
    %290 = vmatpush1.bf16.msra.mxu0 0
    %291 = vmatprep.subr.bf16.mxu0 0
    %292 = vmatpush1.bf16.msra.mxu0 0
    %293 = vmatprep.subr.bf16.mxu0 0
    %294 = vmatpush1.bf16.msra.mxu0 0
    %295 = vmatprep.subr.bf16.mxu0 0
    %296 = vmatpush1.bf16.msra.mxu0 0
    %297 = vmatprep.mubr.bf16.mxu0 0
    %298 = vmatmul.mubr.bf16.gmra.mrb[0].mxu0 %v192
    %v299 = vpop.f32.mrb[0].mxu0
    %v300 = vadd.f32 %v215, %v299
    %v301 = vpop.f32.mrb[0].mxu0
    %v302 = vpop.f32.mrb[0].mxu0
    %v303 = vpop.f32.mrb[0].mxu0
    %304 = vdwg.mxu0
    %v305 = vmax.f32 %v300, 0.0
    %v306 = vpack.c.bf16 %v305, %v305
    %s307 = scalar_lea.vmem [#allocation7], 64
    %v308 = vld [vmem:[%s307] sm:$0xf]
    %v309 = vld [vmem:[%s307 + $0x4] sm:$0xf]
    %v310 = vld [vmem:[%s307 + $0x8] sm:$0xf]
    %v311 = vld [vmem:[%s307 + $0xc] sm:$0xf]
    %v312 = vld [vmem:[%s307 + $0x10] sm:$0xf]
    %v313 = vld [vmem:[%s307 + $0x14] sm:$0xf]
    %v314 = vld [vmem:[%s307 + $0x18] sm:$0xf]
    %v315 = vld [vmem:[%s307 + $0x1c] sm:$0xf]
    %v316 = vld [vmem:[%s307 + $0x20] sm:$0xf]
    %v317 = vld [vmem:[%s307 + $0x24] sm:$0xf]
    %v318 = vld [vmem:[%s307 + $0x28] sm:$0xf]
    %v319 = vld [vmem:[%s307 + $0x2c] sm:$0xf]
    %v320 = vld [vmem:[%s307 + $0x30] sm:$0xf]
    %v321 = vld [vmem:[%s307 + $0x34] sm:$0xf]
    %v322 = vld [vmem:[%s307 + $0x38] sm:$0xf]
    %v323 = vld [vmem:[%s307 + $0x3c] sm:$0xf]
    %s324 = scalar_lea.vmem %s4, 2
    %v325 = vld [vmem:[%s324] sm:$0x1]
    %v327 = vlaneseq
    %v328 = vshrl.u32 %v327, 7
    %v329 = vsub.s32 0, %v328
    %v330 = vrot.slane %v325, %v329
    %v348 = vunpack.c.l.b16 %v308
    %v349 = vunpack.c.l.b16 %v309
    %v350 = vunpack.c.l.b16 %v310
    %v351 = vunpack.c.l.b16 %v311
    %v352 = vunpack.c.l.b16 %v312
    %v353 = vunpack.c.l.b16 %v313
    %v354 = vunpack.c.l.b16 %v314
    %v355 = vunpack.c.l.b16 %v315
    %v356 = vunpack.c.l.b16 %v316
    %v357 = vunpack.c.l.b16 %v317
    %v358 = vunpack.c.l.b16 %v318
    %v359 = vunpack.c.l.b16 %v319
    %v360 = vunpack.c.l.b16 %v320
    %v361 = vunpack.c.l.b16 %v321
    %v362 = vunpack.c.l.b16 %v322
    %v363 = vunpack.c.l.b16 %v323
    %v364 = vpack.c.b16 %v349, %v348
    %v365 = vpack.c.b16 %v351, %v350
    %v366 = vpack.c.b16 %v353, %v352
    %v367 = vpack.c.b16 %v355, %v354
    %v368 = vpack.c.b16 %v357, %v356
    %v369 = vpack.c.b16 %v359, %v358
    %v370 = vpack.c.b16 %v361, %v360
    %v371 = vpack.c.b16 %v363, %v362
    %380 = vmatprep.subr.bf16.mxu0 0
    %381 = vmatpush1.bf16.msra.mxu0 %v364
    %382 = vmatprep.subr.bf16.mxu0 0
    %383 = vmatpush1.bf16.msra.mxu0 %v365
    %384 = vmatprep.subr.bf16.mxu0 0
    %385 = vmatpush1.bf16.msra.mxu0 %v366
    %386 = vmatprep.subr.bf16.mxu0 0
    %387 = vmatpush1.bf16.msra.mxu0 %v367
    %388 = vmatprep.subr.bf16.mxu0 0
    %389 = vmatpush1.bf16.msra.mxu0 %v368
    %390 = vmatprep.subr.bf16.mxu0 0
    %391 = vmatpush1.bf16.msra.mxu0 %v369
    %392 = vmatprep.subr.bf16.mxu0 0
    %393 = vmatpush1.bf16.msra.mxu0 %v370
    %394 = vmatprep.subr.bf16.mxu0 0
    %395 = vmatpush1.bf16.msra.mxu0 %v371
    %396 = vmatprep.subr.bf16.mxu0 0
    %397 = vmatpush1.bf16.msra.mxu0 0
    %398 = vmatprep.subr.bf16.mxu0 0
    %399 = vmatpush1.bf16.msra.mxu0 0
    %400 = vmatprep.subr.bf16.mxu0 0
    %401 = vmatpush1.bf16.msra.mxu0 0
    %402 = vmatprep.subr.bf16.mxu0 0
    %403 = vmatpush1.bf16.msra.mxu0 0
    %404 = vmatprep.subr.bf16.mxu0 0
    %405 = vmatpush1.bf16.msra.mxu0 0
    %406 = vmatprep.subr.bf16.mxu0 0
    %407 = vmatpush1.bf16.msra.mxu0 0
    %408 = vmatprep.subr.bf16.mxu0 0
    %409 = vmatpush1.bf16.msra.mxu0 0
    %410 = vmatprep.subr.bf16.mxu0 0
    %411 = vmatpush1.bf16.msra.mxu0 0
    %412 = vmatprep.mubr.bf16.mxu0 0
    %413 = vmatmul.mubr.bf16.gmra.mrb[0].mxu0 %v306
    %v414 = vpop.f32.mrb[0].mxu0
    %v415 = vadd.f32 %v330, %v414
    %v416 = vpop.f32.mrb[0].mxu0
    %v417 = vpop.f32.mrb[0].mxu0
    %v418 = vpop.f32.mrb[0].mxu0
    %419 = vdwg.mxu0
    %v420 = vmax.f32 %v415, 0.0
    %v421 = vpack.c.bf16 %v420, %v420
    %s422 = scalar_lea.vmem [#allocation7], 128
    %v423 = vld [vmem:[%s422] sm:$0xf]
    %v424 = vld [vmem:[%s422 + $0x4] sm:$0xf]
    %v425 = vld [vmem:[%s422 + $0x8] sm:$0xf]
    %v426 = vld [vmem:[%s422 + $0xc] sm:$0xf]
    %v427 = vld [vmem:[%s422 + $0x10] sm:$0xf]
    %v428 = vld [vmem:[%s422 + $0x14] sm:$0xf]
    %v429 = vld [vmem:[%s422 + $0x18] sm:$0xf]
    %v430 = vld [vmem:[%s422 + $0x1c] sm:$0xf]
    %v431 = vld [vmem:[%s422 + $0x20] sm:$0xf]
    %v432 = vld [vmem:[%s422 + $0x24] sm:$0xf]
    %v433 = vld [vmem:[%s422 + $0x28] sm:$0xf]
    %v434 = vld [vmem:[%s422 + $0x2c] sm:$0xf]
    %v435 = vld [vmem:[%s422 + $0x30] sm:$0xf]
    %v436 = vld [vmem:[%s422 + $0x34] sm:$0xf]
    %v437 = vld [vmem:[%s422 + $0x38] sm:$0xf]
    %v438 = vld [vmem:[%s422 + $0x3c] sm:$0xf]
    %s439 = scalar_lea.vmem %s4, 3
    %v440 = vld [vmem:[%s439] sm:$0x1]
    %v442 = vlaneseq
    %v443 = vshrl.u32 %v442, 7
    %v444 = vsub.s32 0, %v443
    %v445 = vrot.slane %v440, %v444
    %v463 = vunpack.c.l.b16 %v423
    %v464 = vunpack.c.l.b16 %v424
    %v465 = vunpack.c.l.b16 %v425
    %v466 = vunpack.c.l.b16 %v426
    %v467 = vunpack.c.l.b16 %v427
    %v468 = vunpack.c.l.b16 %v428
    %v469 = vunpack.c.l.b16 %v429
    %v470 = vunpack.c.l.b16 %v430
    %v471 = vunpack.c.l.b16 %v431
    %v472 = vunpack.c.l.b16 %v432
    %v473 = vunpack.c.l.b16 %v433
    %v474 = vunpack.c.l.b16 %v434
    %v475 = vunpack.c.l.b16 %v435
    %v476 = vunpack.c.l.b16 %v436
    %v477 = vunpack.c.l.b16 %v437
    %v478 = vunpack.c.l.b16 %v438
    %v479 = vpack.c.b16 %v464, %v463
    %v480 = vpack.c.b16 %v466, %v465
    %v481 = vpack.c.b16 %v468, %v467
    %v482 = vpack.c.b16 %v470, %v469
    %v483 = vpack.c.b16 %v472, %v471
    %v484 = vpack.c.b16 %v474, %v473
    %v485 = vpack.c.b16 %v476, %v475
    %v486 = vpack.c.b16 %v478, %v477
    %495 = vmatprep.subr.bf16.mxu0 0
    %496 = vmatpush1.bf16.msra.mxu0 %v479
    %497 = vmatprep.subr.bf16.mxu0 0
    %498 = vmatpush1.bf16.msra.mxu0 %v480
    %499 = vmatprep.subr.bf16.mxu0 0
    %500 = vmatpush1.bf16.msra.mxu0 %v481
    %501 = vmatprep.subr.bf16.mxu0 0
    %502 = vmatpush1.bf16.msra.mxu0 %v482
    %503 = vmatprep.subr.bf16.mxu0 0
    %504 = vmatpush1.bf16.msra.mxu0 %v483
    %505 = vmatprep.subr.bf16.mxu0 0
    %506 = vmatpush1.bf16.msra.mxu0 %v484
    %507 = vmatprep.subr.bf16.mxu0 0
    %508 = vmatpush1.bf16.msra.mxu0 %v485
    %509 = vmatprep.subr.bf16.mxu0 0
    %510 = vmatpush1.bf16.msra.mxu0 %v486
    %511 = vmatprep.subr.bf16.mxu0 0
    %512 = vmatpush1.bf16.msra.mxu0 0
    %513 = vmatprep.subr.bf16.mxu0 0
    %514 = vmatpush1.bf16.msra.mxu0 0
    %515 = vmatprep.subr.bf16.mxu0 0
    %516 = vmatpush1.bf16.msra.mxu0 0
    %517 = vmatprep.subr.bf16.mxu0 0
    %518 = vmatpush1.bf16.msra.mxu0 0
    %519 = vmatprep.subr.bf16.mxu0 0
    %520 = vmatpush1.bf16.msra.mxu0 0
    %521 = vmatprep.subr.bf16.mxu0 0
    %522 = vmatpush1.bf16.msra.mxu0 0
    %523 = vmatprep.subr.bf16.mxu0 0
    %524 = vmatpush1.bf16.msra.mxu0 0
    %525 = vmatprep.subr.bf16.mxu0 0
    %526 = vmatpush1.bf16.msra.mxu0 0
    %527 = vmatprep.mubr.bf16.mxu0 0
    %528 = vmatmul.mubr.bf16.gmra.mrb[0].mxu0 %v421
    %v529 = vpop.f32.mrb[0].mxu0
    %v530 = vadd.f32 %v445, %v529
    %v531 = vpop.f32.mrb[0].mxu0
    %v532 = vpop.f32.mrb[0].mxu0
    %v533 = vpop.f32.mrb[0].mxu0
    %534 = vdwg.mxu0
    %v535 = vmax.f32 %v530, 0.0
    %v536 = vpack.c.bf16 %v535, %v535
    %v537 = vld [vmem:[#allocation8] sm:$0xf]
    %v538 = vld [vmem:[#allocation8 + $0x4] sm:$0xf]
    %v539 = vld [vmem:[#allocation8 + $0x8] sm:$0xf]
    %v540 = vld [vmem:[#allocation8 + $0xc] sm:$0xf]
    %v541 = vld [vmem:[#allocation8 + $0x10] sm:$0xf]
    %v542 = vld [vmem:[#allocation8 + $0x14] sm:$0xf]
    %v543 = vld [vmem:[#allocation8 + $0x18] sm:$0xf]
    %v544 = vld [vmem:[#allocation8 + $0x1c] sm:$0xf]
    %v545 = vld [vmem:[#allocation8 + $0x20] sm:$0xf]
    %v546 = vld [vmem:[#allocation8 + $0x24] sm:$0xf]
    %v547 = vld [vmem:[#allocation8 + $0x28] sm:$0xf]
    %v548 = vld [vmem:[#allocation8 + $0x2c] sm:$0xf]
    %v549 = vld [vmem:[#allocation8 + $0x30] sm:$0xf]
    %v550 = vld [vmem:[#allocation8 + $0x34] sm:$0xf]
    %v551 = vld [vmem:[#allocation8 + $0x38] sm:$0xf]
    %v552 = vld [vmem:[#allocation8 + $0x3c] sm:$0xf]
    %v553 = vld [vmem:[%s5] sm:$0x1]
    %v555 = vlaneseq
    %v556 = vshrl.u32 %v555, 7
    %v557 = vsub.s32 0, %v556
    %v558 = vrot.slane %v553, %v557
    %v576 = vunpack.c.l.b16 %v537
    %v577 = vunpack.c.l.b16 %v538
    %v578 = vunpack.c.l.b16 %v539
    %v579 = vunpack.c.l.b16 %v540
    %v580 = vunpack.c.l.b16 %v541
    %v581 = vunpack.c.l.b16 %v542
    %v582 = vunpack.c.l.b16 %v543
    %v583 = vunpack.c.l.b16 %v544
    %v584 = vunpack.c.l.b16 %v545
    %v585 = vunpack.c.l.b16 %v546
    %v586 = vunpack.c.l.b16 %v547
    %v587 = vunpack.c.l.b16 %v548
    %v588 = vunpack.c.l.b16 %v549
    %v589 = vunpack.c.l.b16 %v550
    %v590 = vunpack.c.l.b16 %v551
    %v591 = vunpack.c.l.b16 %v552
    %v592 = vpack.c.b16 %v577, %v576
    %v593 = vpack.c.b16 %v579, %v578
    %v594 = vpack.c.b16 %v581, %v580
    %v595 = vpack.c.b16 %v583, %v582
    %v596 = vpack.c.b16 %v585, %v584
    %v597 = vpack.c.b16 %v587, %v586
    %v598 = vpack.c.b16 %v589, %v588
    %v599 = vpack.c.b16 %v591, %v590
    %608 = vmatprep.subr.bf16.mxu0 0
    %609 = vmatpush1.bf16.msra.mxu0 %v592
    %610 = vmatprep.subr.bf16.mxu0 0
    %611 = vmatpush1.bf16.msra.mxu0 %v593
    %612 = vmatprep.subr.bf16.mxu0 0
    %613 = vmatpush1.bf16.msra.mxu0 %v594
    %614 = vmatprep.subr.bf16.mxu0 0
    %615 = vmatpush1.bf16.msra.mxu0 %v595
    %616 = vmatprep.subr.bf16.mxu0 0
    %617 = vmatpush1.bf16.msra.mxu0 %v596
    %618 = vmatprep.subr.bf16.mxu0 0
    %619 = vmatpush1.bf16.msra.mxu0 %v597
    %620 = vmatprep.subr.bf16.mxu0 0
    %621 = vmatpush1.bf16.msra.mxu0 %v598
    %622 = vmatprep.subr.bf16.mxu0 0
    %623 = vmatpush1.bf16.msra.mxu0 %v599
    %624 = vmatprep.subr.bf16.mxu0 0
    %625 = vmatpush1.bf16.msra.mxu0 0
    %626 = vmatprep.subr.bf16.mxu0 0
    %627 = vmatpush1.bf16.msra.mxu0 0
    %628 = vmatprep.subr.bf16.mxu0 0
    %629 = vmatpush1.bf16.msra.mxu0 0
    %630 = vmatprep.subr.bf16.mxu0 0
    %631 = vmatpush1.bf16.msra.mxu0 0
    %632 = vmatprep.subr.bf16.mxu0 0
    %633 = vmatpush1.bf16.msra.mxu0 0
    %634 = vmatprep.subr.bf16.mxu0 0
    %635 = vmatpush1.bf16.msra.mxu0 0
    %636 = vmatprep.subr.bf16.mxu0 0
    %637 = vmatpush1.bf16.msra.mxu0 0
    %638 = vmatprep.subr.bf16.mxu0 0
    %639 = vmatpush1.bf16.msra.mxu0 0
    %640 = vmatprep.mubr.bf16.mxu0 0
    %641 = vmatmul.mubr.bf16.gmra.mrb[0].mxu0 %v536
    %v642 = vpop.f32.mrb[0].mxu0
    %v643 = vadd.f32 %v558, %v642
    %v644 = vpop.f32.mrb[0].mxu0
    %v645 = vpop.f32.mrb[0].mxu0
    %v646 = vpop.f32.mrb[0].mxu0
    %647 = vdwg.mxu0
    %v648 = vlaneseq
    %v649 = vand.u32 %v648, 127
    %vm650 = vcmp.ge.s32.totalorder %v649, 4
    %v651 = vmax.f32 %v643, -20.0
    %v652 = vmin.f32 %v651, 2.0
    %v653 = vsel %vm650, %v652, %v643
    %654 = vst [vmem:[#allocation10] sm:$0xff] %v653
    // Predicated region
    $region42: #{tpu_custom_call.1} parent=1 // pred_check
      _
    $region43: #{tpu_custom_call.1} parent=1 // pred_check_branch
      %656 = sbr.rel (0) target = $region45
    $region44: #{tpu_custom_call.1} parent=1 // pred_region
      %s658 = ssub.s32 128, 128
      %659 = vsyncadd [#allocation4], %s658
      %s661 = sshll.u32 [#allocation10], 4
      %s662 = int_to_ptr.vmem [resolvable:$true] %s661
      %664 = dma.vmem_to_hbm [thread:$0]  %s662, 128, %s6, [#allocation4]
    $region45: #{tpu_custom_call.1} parent=1 // pred_fallthru
      _
    // Predicated region
    $region46: #{tpu_custom_call.1} parent=1 // pred_check
      _
    $region47: #{tpu_custom_call.1} parent=1 // pred_check_branch
      %666 = sbr.rel (0) target = $region49
    $region48: #{tpu_custom_call.1} parent=1 // pred_region
      %667 = dma.done [#allocation4], 128
    $region49: #{tpu_custom_call.1} parent=1 // pred_fallthru
      _
    %668 = vsyncpa [#allocation3], 1
    %669 = vsyncpa [#allocation6], 1
    %670 = vsyncpa [#allocation9], 1
    %671 = vsyncpa [#allocation4], 1

// kernel: tpu_custom_call.1
$region0: #{tpu_custom_call.1}
  #allocation0 [shape = 'u32[]', space=smem, size = 0x4, offset = 0x4, fixed_abs, tag = 'smem constant byte address 0x4 - core index']
  #allocation1 [shape = 'u32[144,128]{1,0:T(1,128)}', space=vmem, size = 0x12000, scoped, tag = 'internal scratch']
  %s0 = inlined_call_operand.hbm [shape: f32[8,128], index: 0, kind: input, shape index: {}]
  %s1 = inlined_call_operand.hbm [shape: bf16[128,128], index: 1, kind: input, shape index: {}]
  %s2 = inlined_call_operand.hbm [shape: bf16[3,128,128], index: 2, kind: input, shape index: {}]
  %s3 = inlined_call_operand.hbm [shape: bf16[128,128], index: 3, kind: input, shape index: {}]
  %s4 = inlined_call_operand.vmem [shape: f32[4,1,128], index: 4, kind: input, shape index: {}]
  %s5 = inlined_call_operand.vmem [shape: f32[1,128], index: 5, kind: input, shape index: {}]
  %s6 = inlined_call_operand.hbm [shape: f32[8,128], index: 6, kind: output, shape index: {}]
  %s7 = sld [smem:[#allocation0]]
  $region50: #{tpu_custom_call.1} parent=0
    _
  %s9 = ssub.s32 1, %s7
  %s10 = scalar_select 0, %s9, %s7
  $region1: #{tpu_custom_call.1} parent=0
    #allocation2 [shape = 'u8[4096]{0}', space=vmem, size = 0x1000, scoped, tag = 'input window, operand 0, single buffered']
    #allocation3 [shape = 's32[1]{0}', space=sflag, size = 0x4, scoped, tag = 'scoped memory for tpu_custom_call.1']
    #allocation4 [shape = 's32[1]{0}', space=sflag, size = 0x4, scoped, tag = 'scoped memory for tpu_custom_call.1']
    #allocation5 [shape = 'u8[32768]{0}', space=vmem, size = 0x8000, scoped, tag = 'input window, operand 1, single buffered']
    #allocation6 [shape = 's32[1]{0}', space=sflag, size = 0x4, scoped, tag = 'scoped memory for tpu_custom_call.1']
    #allocation7 [shape = 'u8[98304]{0}', space=vmem, size = 0x18000, scoped, tag = 'input window, operand 2, single buffered']
    #allocation8 [shape = 'u8[32768]{0}', space=vmem, size = 0x8000, scoped, tag = 'input window, operand 3, single buffered']
    #allocation9 [shape = 's32[1]{0}', space=sflag, size = 0x4, scoped, tag = 'scoped memory for tpu_custom_call.1']
    #allocation10 [shape = 'u8[4096]{0}', space=vmem, size = 0x1000, scoped, tag = 'output window, operand 0, single buffered']
    %11 = vsyncpa [#allocation3], 0
    %12 = vsyncpa [#allocation6], 0
    %13 = vsyncpa [#allocation9], 0
    %14 = vsyncpa [#allocation4], 0
    // Predicated region
    $region2: #{tpu_custom_call.1} parent=1 // pred_check
      _
    $region3: #{tpu_custom_call.1} parent=1 // pred_check_branch
      %16 = sbr.rel (0) target = $region5
    $region4: #{tpu_custom_call.1} parent=1 // pred_region
      %s18 = ssub.s32 128, 128
      %19 = vsyncadd [#allocation3], %s18
      %s21 = sshll.u32 [#allocation2], 4
      %s22 = int_to_ptr.vmem [resolvable:$true] %s21
      %24 = dma.hbm_to_vmem [thread:$0]  %s0, 128, %s22, [#allocation3]
    $region5: #{tpu_custom_call.1} parent=1 // pred_fallthru
      _
    // Predicated region
    $region6: #{tpu_custom_call.1} parent=1 // pred_check
      _
    $region7: #{tpu_custom_call.1} parent=1 // pred_check_branch
      %26 = sbr.rel (0) target = $region9
    $region8: #{tpu_custom_call.1} parent=1 // pred_region
      %s28 = ssub.s32 1024, 1024
      %29 = vsyncadd [#allocation6], %s28
      %s30 = sshll.u32 [#allocation5], 4
      %s31 = int_to_ptr.vmem [resolvable:$true] %s30
      %36 = dma.hbm_to_vmem [thread:$0]  %s1, 1024, %s31, [#allocation6], 64, 64, 4
    $region9: #{tpu_custom_call.1} parent=1 // pred_fallthru
      _
    // Predicated region
    $region10: #{tpu_custom_call.1} parent=1 // pred_check
      _
    $region11: #{tpu_custom_call.1} parent=1 // pred_check_branch
      %38 = sbr.rel (0) target = $region13
    $region12: #{tpu_custom_call.1} parent=1 // pred_region
      %s40 = ssub.s32 3072, 3072
      %41 = vsyncadd [#allocation6], %s40
      %s42 = sshll.u32 [#allocation7], 4
      %s43 = int_to_ptr.vmem [resolvable:$true] %s42
      %48 = dma.hbm_to_vmem [thread:$0]  %s2, 3072, %s43, [#allocation6], 64, 64, 4
    $region13: #{tpu_custom_call.1} parent=1 // pred_fallthru
      _
    // Predicated region
    $region14: #{tpu_custom_call.1} parent=1 // pred_check
      _
    $region15: #{tpu_custom_call.1} parent=1 // pred_check_branch
      %50 = sbr.rel (0) target = $region17
    $region16: #{tpu_custom_call.1} parent=1 // pred_region
      %s52 = ssub.s32 1024, 1024
      %53 = vsyncadd [#allocation9], %s52
      %s54 = sshll.u32 [#allocation8], 4
      %s55 = int_to_ptr.vmem [resolvable:$true] %s54
      %60 = dma.hbm_to_vmem [thread:$0]  %s3, 1024, %s55, [#allocation9], 64, 64, 4
    $region17: #{tpu_custom_call.1} parent=1 // pred_fallthru
      _
    // Predicated region
    $region18: #{tpu_custom_call.1} parent=1 // pred_check
      _
    $region19: #{tpu_custom_call.1} parent=1 // pred_check_branch
      %62 = sbr.rel (0) target = $region21
    $region20: #{tpu_custom_call.1} parent=1 // pred_region
      _
    $region21: #{tpu_custom_call.1} parent=1 // pred_fallthru
      _
    // Predicated region
    $region22: #{tpu_custom_call.1} parent=1 // pred_check
      _
    $region23: #{tpu_custom_call.1} parent=1 // pred_check_branch
      %64 = sbr.rel (0) target = $region25
    $region24: #{tpu_custom_call.1} parent=1 // pred_region
      _
    $region25: #{tpu_custom_call.1} parent=1 // pred_fallthru
      _
    // Predicated region
    $region26: #{tpu_custom_call.1} parent=1 // pred_check
      _
    $region27: #{tpu_custom_call.1} parent=1 // pred_check_branch
      %66 = sbr.rel (0) target = $region29
    $region28: #{tpu_custom_call.1} parent=1 // pred_region
      %67 = dma.done [#allocation3], 128
    $region29: #{tpu_custom_call.1} parent=1 // pred_fallthru
      _
    // Predicated region
    $region30: #{tpu_custom_call.1} parent=1 // pred_check
      _
    $region31: #{tpu_custom_call.1} parent=1 // pred_check_branch
      %69 = sbr.rel (0) target = $region33
    $region32: #{tpu_custom_call.1} parent=1 // pred_region
      %70 = dma.done [#allocation6], 1024
    $region33: #{tpu_custom_call.1} parent=1 // pred_fallthru
      _
    // Predicated region
    $region34: #{tpu_custom_call.1} parent=1 // pred_check
      _
    $region35: #{tpu_custom_call.1} parent=1 // pred_check_branch
      %72 = sbr.rel (0) target = $region37
    $region36: #{tpu_custom_call.1} parent=1 // pred_region
      %73 = dma.done [#allocation6], 3072
    $region37: #{tpu_custom_call.1} parent=1 // pred_fallthru
      _
    // Predicated region
    $region38: #{tpu_custom_call.1} parent=1 // pred_check
      _
    $region39: #{tpu_custom_call.1} parent=1 // pred_check_branch
      %75 = sbr.rel (0) target = $region41
    $region40: #{tpu_custom_call.1} parent=1 // pred_region
      %76 = dma.done [#allocation9], 1024
    $region41: #{tpu_custom_call.1} parent=1 // pred_fallthru
      _
    %v78 = vld [vmem:[#allocation2] sm:$0xff]
    %v79 = vpack.c.bf16 %v78, %v78
    %v80 = vld [vmem:[#allocation5] sm:$0xf]
    %v81 = vld [vmem:[#allocation5 + $0x4] sm:$0xf]
    %v82 = vld [vmem:[#allocation5 + $0x8] sm:$0xf]
    %v83 = vld [vmem:[#allocation5 + $0xc] sm:$0xf]
    %v84 = vld [vmem:[#allocation5 + $0x10] sm:$0xf]
    %v85 = vld [vmem:[#allocation5 + $0x14] sm:$0xf]
    %v86 = vld [vmem:[#allocation5 + $0x18] sm:$0xf]
    %v87 = vld [vmem:[#allocation5 + $0x1c] sm:$0xf]
    %v88 = vld [vmem:[#allocation5 + $0x20] sm:$0xf]
    %v89 = vld [vmem:[#allocation5 + $0x24] sm:$0xf]
    %v90 = vld [vmem:[#allocation5 + $0x28] sm:$0xf]
    %v91 = vld [vmem:[#allocation5 + $0x2c] sm:$0xf]
    %v92 = vld [vmem:[#allocation5 + $0x30] sm:$0xf]
    %v93 = vld [vmem:[#allocation5 + $0x34] sm:$0xf]
    %v94 = vld [vmem:[#allocation5 + $0x38] sm:$0xf]
    %v95 = vld [vmem:[#allocation5 + $0x3c] sm:$0xf]
    %v96 = vld [vmem:[%s4] sm:$0x1]
    %v98 = vlaneseq
    %v99 = vshrl.u32 %v98, 7
    %v100 = vsub.s32 0, %v99
    %v101 = vrot.slane %v96, %v100
    %v119 = vunpack.c.l.b16 %v80
    %v120 = vunpack.c.l.b16 %v81
    %v121 = vunpack.c.l.b16 %v82
    %v122 = vunpack.c.l.b16 %v83
    %v123 = vunpack.c.l.b16 %v84
    %v124 = vunpack.c.l.b16 %v85
    %v125 = vunpack.c.l.b16 %v86
    %v126 = vunpack.c.l.b16 %v87
    %v127 = vunpack.c.l.b16 %v88
    %v128 = vunpack.c.l.b16 %v89
    %v129 = vunpack.c.l.b16 %v90
    %v130 = vunpack.c.l.b16 %v91
    %v131 = vunpack.c.l.b16 %v92
    %v132 = vunpack.c.l.b16 %v93
    %v133 = vunpack.c.l.b16 %v94
    %v134 = vunpack.c.l.b16 %v95
    %v135 = vpack.c.b16 %v120, %v119
    %v136 = vpack.c.b16 %v122, %v121
    %v137 = vpack.c.b16 %v124, %v123
    %v138 = vpack.c.b16 %v126, %v125
    %v139 = vpack.c.b16 %v128, %v127
    %v140 = vpack.c.b16 %v130, %v129
    %v141 = vpack.c.b16 %v132, %v131
    %v142 = vpack.c.b16 %v134, %v133
    %151 = vmatprep.subr.bf16.mxu0 0
    %152 = vmatpush1.bf16.msra.mxu0 %v135
    %153 = vmatprep.subr.bf16.mxu0 0
    %154 = vmatpush1.bf16.msra.mxu0 %v136
    %155 = vmatprep.subr.bf16.mxu0 0
    %156 = vmatpush1.bf16.msra.mxu0 %v137
    %157 = vmatprep.subr.bf16.mxu0 0
    %158 = vmatpush1.bf16.msra.mxu0 %v138
    %159 = vmatprep.subr.bf16.mxu0 0
    %160 = vmatpush1.bf16.msra.mxu0 %v139
    %161 = vmatprep.subr.bf16.mxu0 0
    %162 = vmatpush1.bf16.msra.mxu0 %v140
    %163 = vmatprep.subr.bf16.mxu0 0
    %164 = vmatpush1.bf16.msra.mxu0 %v141
    %165 = vmatprep.subr.bf16.mxu0 0
    %166 = vmatpush1.bf16.msra.mxu0 %v142
    %167 = vmatprep.subr.bf16.mxu0 0
    %168 = vmatpush1.bf16.msra.mxu0 0
    %169 = vmatprep.subr.bf16.mxu0 0
    %170 = vmatpush1.bf16.msra.mxu0 0
    %171 = vmatprep.subr.bf16.mxu0 0
    %172 = vmatpush1.bf16.msra.mxu0 0
    %173 = vmatprep.subr.bf16.mxu0 0
    %174 = vmatpush1.bf16.msra.mxu0 0
    %175 = vmatprep.subr.bf16.mxu0 0
    %176 = vmatpush1.bf16.msra.mxu0 0
    %177 = vmatprep.subr.bf16.mxu0 0
    %178 = vmatpush1.bf16.msra.mxu0 0
    %179 = vmatprep.subr.bf16.mxu0 0
    %180 = vmatpush1.bf16.msra.mxu0 0
    %181 = vmatprep.subr.bf16.mxu0 0
    %182 = vmatpush1.bf16.msra.mxu0 0
    %183 = vmatprep.mubr.bf16.mxu0 0
    %184 = vmatmul.mubr.bf16.gmra.mrb[0].mxu0 %v79
    %v185 = vpop.f32.mrb[0].mxu0
    %v186 = vadd.f32 %v101, %v185
    %v187 = vpop.f32.mrb[0].mxu0
    %v188 = vpop.f32.mrb[0].mxu0
    %v189 = vpop.f32.mrb[0].mxu0
    %190 = vdwg.mxu0
    %v191 = vmax.f32 %v186, 0.0
    %v192 = vpack.c.bf16 %v191, %v191
    %v193 = vld [vmem:[#allocation7] sm:$0xf]
    %v194 = vld [vmem:[#allocation7 + $0x4] sm:$0xf]
    %v195 = vld [vmem:[#allocation7 + $0x8] sm:$0xf]
    %v196 = vld [vmem:[#allocation7 + $0xc] sm:$0xf]
    %v197 = vld [vmem:[#allocation7 + $0x10] sm:$0xf]
    %v198 = vld [vmem:[#allocation7 + $0x14] sm:$0xf]
    %v199 = vld [vmem:[#allocation7 + $0x18] sm:$0xf]
    %v200 = vld [vmem:[#allocation7 + $0x1c] sm:$0xf]
    %v201 = vld [vmem:[#allocation7 + $0x20] sm:$0xf]
    %v202 = vld [vmem:[#allocation7 + $0x24] sm:$0xf]
    %v203 = vld [vmem:[#allocation7 + $0x28] sm:$0xf]
    %v204 = vld [vmem:[#allocation7 + $0x2c] sm:$0xf]
    %v205 = vld [vmem:[#allocation7 + $0x30] sm:$0xf]
    %v206 = vld [vmem:[#allocation7 + $0x34] sm:$0xf]
    %v207 = vld [vmem:[#allocation7 + $0x38] sm:$0xf]
    %v208 = vld [vmem:[#allocation7 + $0x3c] sm:$0xf]
    %s209 = scalar_lea.vmem %s4, 1
    %v210 = vld [vmem:[%s209] sm:$0x1]
    %v212 = vlaneseq
    %v213 = vshrl.u32 %v212, 7
    %v214 = vsub.s32 0, %v213
    %v215 = vrot.slane %v210, %v214
    %v233 = vunpack.c.l.b16 %v193
    %v234 = vunpack.c.l.b16 %v194
    %v235 = vunpack.c.l.b16 %v195
    %v236 = vunpack.c.l.b16 %v196
    %v237 = vunpack.c.l.b16 %v197
    %v238 = vunpack.c.l.b16 %v198
    %v239 = vunpack.c.l.b16 %v199
    %v240 = vunpack.c.l.b16 %v200
    %v241 = vunpack.c.l.b16 %v201
    %v242 = vunpack.c.l.b16 %v202
    %v243 = vunpack.c.l.b16 %v203
    %v244 = vunpack.c.l.b16 %v204
    %v245 = vunpack.c.l.b16 %v205
    %v246 = vunpack.c.l.b16 %v206
    %v247 = vunpack.c.l.b16 %v207
    %v248 = vunpack.c.l.b16 %v208
    %v249 = vpack.c.b16 %v234, %v233
    %v250 = vpack.c.b16 %v236, %v235
    %v251 = vpack.c.b16 %v238, %v237
    %v252 = vpack.c.b16 %v240, %v239
    %v253 = vpack.c.b16 %v242, %v241
    %v254 = vpack.c.b16 %v244, %v243
    %v255 = vpack.c.b16 %v246, %v245
    %v256 = vpack.c.b16 %v248, %v247
    %265 = vmatprep.subr.bf16.mxu0 0
    %266 = vmatpush1.bf16.msra.mxu0 %v249
    %267 = vmatprep.subr.bf16.mxu0 0
    %268 = vmatpush1.bf16.msra.mxu0 %v250
    %269 = vmatprep.subr.bf16.mxu0 0
    %270 = vmatpush1.bf16.msra.mxu0 %v251
    %271 = vmatprep.subr.bf16.mxu0 0
    %272 = vmatpush1.bf16.msra.mxu0 %v252
    %273 = vmatprep.subr.bf16.mxu0 0
    %274 = vmatpush1.bf16.msra.mxu0 %v253
    %275 = vmatprep.subr.bf16.mxu0 0
    %276 = vmatpush1.bf16.msra.mxu0 %v254
    %277 = vmatprep.subr.bf16.mxu0 0
    %278 = vmatpush1.bf16.msra.mxu0 %v255
    %279 = vmatprep.subr.bf16.mxu0 0
    %280 = vmatpush1.bf16.msra.mxu0 %v256
    %281 = vmatprep.subr.bf16.mxu0 0
    %282 = vmatpush1.bf16.msra.mxu0 0
    %283 = vmatprep.subr.bf16.mxu0 0
    %284 = vmatpush1.bf16.msra.mxu0 0
    %285 = vmatprep.subr.bf16.mxu0 0
    %286 = vmatpush1.bf16.msra.mxu0 0
    %287 = vmatprep.subr.bf16.mxu0 0
    %288 = vmatpush1.bf16.msra.mxu0 0
    %289 = vmatprep.subr.bf16.mxu0 0
    %290 = vmatpush1.bf16.msra.mxu0 0
    %291 = vmatprep.subr.bf16.mxu0 0
    %292 = vmatpush1.bf16.msra.mxu0 0
    %293 = vmatprep.subr.bf16.mxu0 0
    %294 = vmatpush1.bf16.msra.mxu0 0
    %295 = vmatprep.subr.bf16.mxu0 0
    %296 = vmatpush1.bf16.msra.mxu0 0
    %297 = vmatprep.mubr.bf16.mxu0 0
    %298 = vmatmul.mubr.bf16.gmra.mrb[0].mxu0 %v192
    %v299 = vpop.f32.mrb[0].mxu0
    %v300 = vadd.f32 %v215, %v299
    %v301 = vpop.f32.mrb[0].mxu0
    %v302 = vpop.f32.mrb[0].mxu0
    %v303 = vpop.f32.mrb[0].mxu0
    %304 = vdwg.mxu0
    %v305 = vmax.f32 %v300, 0.0
    %v306 = vpack.c.bf16 %v305, %v305
    %s307 = scalar_lea.vmem [#allocation7], 64
    %v308 = vld [vmem:[%s307] sm:$0xf]
    %v309 = vld [vmem:[%s307 + $0x4] sm:$0xf]
    %v310 = vld [vmem:[%s307 + $0x8] sm:$0xf]
    %v311 = vld [vmem:[%s307 + $0xc] sm:$0xf]
    %v312 = vld [vmem:[%s307 + $0x10] sm:$0xf]
    %v313 = vld [vmem:[%s307 + $0x14] sm:$0xf]
    %v314 = vld [vmem:[%s307 + $0x18] sm:$0xf]
    %v315 = vld [vmem:[%s307 + $0x1c] sm:$0xf]
    %v316 = vld [vmem:[%s307 + $0x20] sm:$0xf]
    %v317 = vld [vmem:[%s307 + $0x24] sm:$0xf]
    %v318 = vld [vmem:[%s307 + $0x28] sm:$0xf]
    %v319 = vld [vmem:[%s307 + $0x2c] sm:$0xf]
    %v320 = vld [vmem:[%s307 + $0x30] sm:$0xf]
    %v321 = vld [vmem:[%s307 + $0x34] sm:$0xf]
    %v322 = vld [vmem:[%s307 + $0x38] sm:$0xf]
    %v323 = vld [vmem:[%s307 + $0x3c] sm:$0xf]
    %s324 = scalar_lea.vmem %s4, 2
    %v325 = vld [vmem:[%s324] sm:$0x1]
    %v327 = vlaneseq
    %v328 = vshrl.u32 %v327, 7
    %v329 = vsub.s32 0, %v328
    %v330 = vrot.slane %v325, %v329
    %v348 = vunpack.c.l.b16 %v308
    %v349 = vunpack.c.l.b16 %v309
    %v350 = vunpack.c.l.b16 %v310
    %v351 = vunpack.c.l.b16 %v311
    %v352 = vunpack.c.l.b16 %v312
    %v353 = vunpack.c.l.b16 %v313
    %v354 = vunpack.c.l.b16 %v314
    %v355 = vunpack.c.l.b16 %v315
    %v356 = vunpack.c.l.b16 %v316
    %v357 = vunpack.c.l.b16 %v317
    %v358 = vunpack.c.l.b16 %v318
    %v359 = vunpack.c.l.b16 %v319
    %v360 = vunpack.c.l.b16 %v320
    %v361 = vunpack.c.l.b16 %v321
    %v362 = vunpack.c.l.b16 %v322
    %v363 = vunpack.c.l.b16 %v323
    %v364 = vpack.c.b16 %v349, %v348
    %v365 = vpack.c.b16 %v351, %v350
    %v366 = vpack.c.b16 %v353, %v352
    %v367 = vpack.c.b16 %v355, %v354
    %v368 = vpack.c.b16 %v357, %v356
    %v369 = vpack.c.b16 %v359, %v358
    %v370 = vpack.c.b16 %v361, %v360
    %v371 = vpack.c.b16 %v363, %v362
    %380 = vmatprep.subr.bf16.mxu0 0
    %381 = vmatpush1.bf16.msra.mxu0 %v364
    %382 = vmatprep.subr.bf16.mxu0 0
    %383 = vmatpush1.bf16.msra.mxu0 %v365
    %384 = vmatprep.subr.bf16.mxu0 0
    %385 = vmatpush1.bf16.msra.mxu0 %v366
    %386 = vmatprep.subr.bf16.mxu0 0
    %387 = vmatpush1.bf16.msra.mxu0 %v367
    %388 = vmatprep.subr.bf16.mxu0 0
    %389 = vmatpush1.bf16.msra.mxu0 %v368
    %390 = vmatprep.subr.bf16.mxu0 0
    %391 = vmatpush1.bf16.msra.mxu0 %v369
    %392 = vmatprep.subr.bf16.mxu0 0
    %393 = vmatpush1.bf16.msra.mxu0 %v370
    %394 = vmatprep.subr.bf16.mxu0 0
    %395 = vmatpush1.bf16.msra.mxu0 %v371
    %396 = vmatprep.subr.bf16.mxu0 0
    %397 = vmatpush1.bf16.msra.mxu0 0
    %398 = vmatprep.subr.bf16.mxu0 0
    %399 = vmatpush1.bf16.msra.mxu0 0
    %400 = vmatprep.subr.bf16.mxu0 0
    %401 = vmatpush1.bf16.msra.mxu0 0
    %402 = vmatprep.subr.bf16.mxu0 0
    %403 = vmatpush1.bf16.msra.mxu0 0
    %404 = vmatprep.subr.bf16.mxu0 0
    %405 = vmatpush1.bf16.msra.mxu0 0
    %406 = vmatprep.subr.bf16.mxu0 0
    %407 = vmatpush1.bf16.msra.mxu0 0
    %408 = vmatprep.subr.bf16.mxu0 0
    %409 = vmatpush1.bf16.msra.mxu0 0
    %410 = vmatprep.subr.bf16.mxu0 0
    %411 = vmatpush1.bf16.msra.mxu0 0
    %412 = vmatprep.mubr.bf16.mxu0 0
    %413 = vmatmul.mubr.bf16.gmra.mrb[0].mxu0 %v306
    %v414 = vpop.f32.mrb[0].mxu0
    %v415 = vadd.f32 %v330, %v414
    %v416 = vpop.f32.mrb[0].mxu0
    %v417 = vpop.f32.mrb[0].mxu0
    %v418 = vpop.f32.mrb[0].mxu0
    %419 = vdwg.mxu0
    %v420 = vmax.f32 %v415, 0.0
    %v421 = vpack.c.bf16 %v420, %v420
    %s422 = scalar_lea.vmem [#allocation7], 128
    %v423 = vld [vmem:[%s422] sm:$0xf]
    %v424 = vld [vmem:[%s422 + $0x4] sm:$0xf]
    %v425 = vld [vmem:[%s422 + $0x8] sm:$0xf]
    %v426 = vld [vmem:[%s422 + $0xc] sm:$0xf]
    %v427 = vld [vmem:[%s422 + $0x10] sm:$0xf]
    %v428 = vld [vmem:[%s422 + $0x14] sm:$0xf]
    %v429 = vld [vmem:[%s422 + $0x18] sm:$0xf]
    %v430 = vld [vmem:[%s422 + $0x1c] sm:$0xf]
    %v431 = vld [vmem:[%s422 + $0x20] sm:$0xf]
    %v432 = vld [vmem:[%s422 + $0x24] sm:$0xf]
    %v433 = vld [vmem:[%s422 + $0x28] sm:$0xf]
    %v434 = vld [vmem:[%s422 + $0x2c] sm:$0xf]
    %v435 = vld [vmem:[%s422 + $0x30] sm:$0xf]
    %v436 = vld [vmem:[%s422 + $0x34] sm:$0xf]
    %v437 = vld [vmem:[%s422 + $0x38] sm:$0xf]
    %v438 = vld [vmem:[%s422 + $0x3c] sm:$0xf]
    %s439 = scalar_lea.vmem %s4, 3
    %v440 = vld [vmem:[%s439] sm:$0x1]
    %v442 = vlaneseq
    %v443 = vshrl.u32 %v442, 7
    %v444 = vsub.s32 0, %v443
    %v445 = vrot.slane %v440, %v444
    %v463 = vunpack.c.l.b16 %v423
    %v464 = vunpack.c.l.b16 %v424
    %v465 = vunpack.c.l.b16 %v425
    %v466 = vunpack.c.l.b16 %v426
    %v467 = vunpack.c.l.b16 %v427
    %v468 = vunpack.c.l.b16 %v428
    %v469 = vunpack.c.l.b16 %v429
    %v470 = vunpack.c.l.b16 %v430
    %v471 = vunpack.c.l.b16 %v431
    %v472 = vunpack.c.l.b16 %v432
    %v473 = vunpack.c.l.b16 %v433
    %v474 = vunpack.c.l.b16 %v434
    %v475 = vunpack.c.l.b16 %v435
    %v476 = vunpack.c.l.b16 %v436
    %v477 = vunpack.c.l.b16 %v437
    %v478 = vunpack.c.l.b16 %v438
    %v479 = vpack.c.b16 %v464, %v463
    %v480 = vpack.c.b16 %v466, %v465
    %v481 = vpack.c.b16 %v468, %v467
    %v482 = vpack.c.b16 %v470, %v469
    %v483 = vpack.c.b16 %v472, %v471
    %v484 = vpack.c.b16 %v474, %v473
    %v485 = vpack.c.b16 %v476, %v475
    %v486 = vpack.c.b16 %v478, %v477
    %495 = vmatprep.subr.bf16.mxu0 0
    %496 = vmatpush1.bf16.msra.mxu0 %v479
    %497 = vmatprep.subr.bf16.mxu0 0
    %498 = vmatpush1.bf16.msra.mxu0 %v480
    %499 = vmatprep.subr.bf16.mxu0 0
    %500 = vmatpush1.bf16.msra.mxu0 %v481
    %501 = vmatprep.subr.bf16.mxu0 0
    %502 = vmatpush1.bf16.msra.mxu0 %v482
    %503 = vmatprep.subr.bf16.mxu0 0
    %504 = vmatpush1.bf16.msra.mxu0 %v483
    %505 = vmatprep.subr.bf16.mxu0 0
    %506 = vmatpush1.bf16.msra.mxu0 %v484
    %507 = vmatprep.subr.bf16.mxu0 0
    %508 = vmatpush1.bf16.msra.mxu0 %v485
    %509 = vmatprep.subr.bf16.mxu0 0
    %510 = vmatpush1.bf16.msra.mxu0 %v486
    %511 = vmatprep.subr.bf16.mxu0 0
    %512 = vmatpush1.bf16.msra.mxu0 0
    %513 = vmatprep.subr.bf16.mxu0 0
    %514 = vmatpush1.bf16.msra.mxu0 0
    %515 = vmatprep.subr.bf16.mxu0 0
    %516 = vmatpush1.bf16.msra.mxu0 0
    %517 = vmatprep.subr.bf16.mxu0 0
    %518 = vmatpush1.bf16.msra.mxu0 0
    %519 = vmatprep.subr.bf16.mxu0 0
    %520 = vmatpush1.bf16.msra.mxu0 0
    %521 = vmatprep.subr.bf16.mxu0 0
    %522 = vmatpush1.bf16.msra.mxu0 0
    %523 = vmatprep.subr.bf16.mxu0 0
    %524 = vmatpush1.bf16.msra.mxu0 0
    %525 = vmatprep.subr.bf16.mxu0 0
    %526 = vmatpush1.bf16.msra.mxu0 0
    %527 = vmatprep.mubr.bf16.mxu0 0
    %528 = vmatmul.mubr.bf16.gmra.mrb[0].mxu0 %v421
    %v529 = vpop.f32.mrb[0].mxu0
    %v530 = vadd.f32 %v445, %v529
    %v531 = vpop.f32.mrb[0].mxu0
    %v532 = vpop.f32.mrb[0].mxu0
    %v533 = vpop.f32.mrb[0].mxu0
    %534 = vdwg.mxu0
    %v535 = vmax.f32 %v530, 0.0
    %v536 = vpack.c.bf16 %v535, %v535
    %v537 = vld [vmem:[#allocation8] sm:$0xf]
    %v538 = vld [vmem:[#allocation8 + $0x4] sm:$0xf]
    %v539 = vld [vmem:[#allocation8 + $0x8] sm:$0xf]
    %v540 = vld [vmem:[#allocation8 + $0xc] sm:$0xf]
    %v541 = vld [vmem:[#allocation8 + $0x10] sm:$0xf]
    %v542 = vld [vmem:[#allocation8 + $0x14] sm:$0xf]
    %v543 = vld [vmem:[#allocation8 + $0x18] sm:$0xf]
    %v544 = vld [vmem:[#allocation8 + $0x1c] sm:$0xf]
    %v545 = vld [vmem:[#allocation8 + $0x20] sm:$0xf]
    %v546 = vld [vmem:[#allocation8 + $0x24] sm:$0xf]
    %v547 = vld [vmem:[#allocation8 + $0x28] sm:$0xf]
    %v548 = vld [vmem:[#allocation8 + $0x2c] sm:$0xf]
    %v549 = vld [vmem:[#allocation8 + $0x30] sm:$0xf]
    %v550 = vld [vmem:[#allocation8 + $0x34] sm:$0xf]
    %v551 = vld [vmem:[#allocation8 + $0x38] sm:$0xf]
    %v552 = vld [vmem:[#allocation8 + $0x3c] sm:$0xf]
    %v553 = vld [vmem:[%s5] sm:$0x1]
    %v555 = vlaneseq
    %v556 = vshrl.u32 %v555, 7
    %v557 = vsub.s32 0, %v556
    %v558 = vrot.slane %v553, %v557
    %v576 = vunpack.c.l.b16 %v537
    %v577 = vunpack.c.l.b16 %v538
    %v578 = vunpack.c.l.b16 %v539
    %v579 = vunpack.c.l.b16 %v540
    %v580 = vunpack.c.l.b16 %v541
    %v581 = vunpack.c.l.b16 %v542
    %v582 = vunpack.c.l.b16 %v543
    %v583 = vunpack.c.l.b16 %v544
    %v584 = vunpack.c.l.b16 %v545
    %v585 = vunpack.c.l.b16 %v546
    %v586 = vunpack.c.l.b16 %v547
    %v587 = vunpack.c.l.b16 %v548
    %v588 = vunpack.c.l.b16 %v549
    %v589 = vunpack.c.l.b16 %v550
    %v590 = vunpack.c.l.b16 %v551
    %v591 = vunpack.c.l.b16 %v552
    %v592 = vpack.c.b16 %v577, %v576
    %v593 = vpack.c.b16 %v579, %v578
    %v594 = vpack.c.b16 %v581, %v580
    %v595 = vpack.c.b16 %v583, %v582
    %v596 = vpack.c.b16 %v585, %v584
    %v597 = vpack.c.b16 %v587, %v586
    %v598 = vpack.c.b16 %v589, %v588
    %v599 = vpack.c.b16 %v591, %v590
    %608 = vmatprep.subr.bf16.mxu0 0
    %609 = vmatpush1.bf16.msra.mxu0 %v592
    %610 = vmatprep.subr.bf16.mxu0 0
    %611 = vmatpush1.bf16.msra.mxu0 %v593
    %612 = vmatprep.subr.bf16.mxu0 0
    %613 = vmatpush1.bf16.msra.mxu0 %v594
    %614 = vmatprep.subr.bf16.mxu0 0
    %615 = vmatpush1.bf16.msra.mxu0 %v595
    %616 = vmatprep.subr.bf16.mxu0 0
    %617 = vmatpush1.bf16.msra.mxu0 %v596
    %618 = vmatprep.subr.bf16.mxu0 0
    %619 = vmatpush1.bf16.msra.mxu0 %v597
    %620 = vmatprep.subr.bf16.mxu0 0
    %621 = vmatpush1.bf16.msra.mxu0 %v598
    %622 = vmatprep.subr.bf16.mxu0 0
    %623 = vmatpush1.bf16.msra.mxu0 %v599
    %624 = vmatprep.subr.bf16.mxu0 0
    %625 = vmatpush1.bf16.msra.mxu0 0
    %626 = vmatprep.subr.bf16.mxu0 0
    %627 = vmatpush1.bf16.msra.mxu0 0
    %628 = vmatprep.subr.bf16.mxu0 0
    %629 = vmatpush1.bf16.msra.mxu0 0
    %630 = vmatprep.subr.bf16.mxu0 0
    %631 = vmatpush1.bf16.msra.mxu0 0
    %632 = vmatprep.subr.bf16.mxu0 0
    %633 = vmatpush1.bf16.msra.mxu0 0
    %634 = vmatprep.subr.bf16.mxu0 0
    %635 = vmatpush1.bf16.msra.mxu0 0
    %636 = vmatprep.subr.bf16.mxu0 0
    %637 = vmatpush1.bf16.msra.mxu0 0
    %638 = vmatprep.subr.bf16.mxu0 0
    %639 = vmatpush1.bf16.msra.mxu0 0
    %640 = vmatprep.mubr.bf16.mxu0 0
    %641 = vmatmul.mubr.bf16.gmra.mrb[0].mxu0 %v536
    %v642 = vpop.f32.mrb[0].mxu0
    %v643 = vadd.f32 %v558, %v642
    %v644 = vpop.f32.mrb[0].mxu0
    %v645 = vpop.f32.mrb[0].mxu0
    %v646 = vpop.f32.mrb[0].mxu0
    %647 = vdwg.mxu0
    %v648 = vlaneseq
    %v649 = vand.u32 %v648, 127
    %vm650 = vcmp.ge.s32.totalorder %v649, 4
    %v651 = vmax.f32 %v643, -20.0
    %v652 = vmin.f32 %v651, 2.0
    %v653 = vsel %vm650, %v652, %v643
    %654 = vst [vmem:[#allocation10] sm:$0xff] %v653
    // Predicated region
    $region42: #{tpu_custom_call.1} parent=1 // pred_check
      _
    $region43: #{tpu_custom_call.1} parent=1 // pred_check_branch
      %656 = sbr.rel (0) target = $region45
    $region44: #{tpu_custom_call.1} parent=1 // pred_region
      %s658 = ssub.s32 128, 128
      %659 = vsyncadd [#allocation4], %s658
      %s661 = sshll.u32 [#allocation10], 4
      %s662 = int_to_ptr.vmem [resolvable:$true] %s661
      %664 = dma.vmem_to_hbm [thread:$0]  %s662, 128, %s6, [#allocation4]
    $region45: #{tpu_custom_call.1} parent=1 // pred_fallthru
      _
    // Predicated region
    $region46: #{tpu_custom_call.1} parent=1 // pred_check
      _
    $region47: #{tpu_custom_call.1} parent=1 // pred_check_branch
      %666 = sbr.rel (0) target = $region49
    $region48: #{tpu_custom_call.1} parent=1 // pred_region
      %667 = dma.done [#allocation4], 128
    $region49: #{tpu_custom_call.1} parent=1 // pred_fallthru
      _
    %668 = vsyncpa [#allocation3], 1
    %669 = vsyncpa [#allocation6], 1
    %670 = vsyncpa [#allocation9], 1
    %671 = vsyncpa [#allocation4], 1

</llo_original>
